<compile_context>
chip_gen: v6e
topology: v6e:2x2x1
jax: 0.10.0
libtpu: 0.0.40
codegen_flags: <defaults>
</compile_context>

<pallas_src>
import math

import jax
import jax.numpy as jnp
from jax import lax
from jax.experimental import pallas as pl
from jax.experimental.pallas import tpu as pltpu

HIDDEN = 128            # hidden_size
NUM_BLOCKS = 3          # hidden_layers
OUT_DIM = 2             # out_dim
OUT_PAD = 128           # lane-dense padded output width
INPUT_DIM = 2           # x has 2 columns
CONCAT = INPUT_DIM + 1  # [x0, x1, t] -> 3
PACK = 8                # lane-padded packed-input width (zero-padded columns)

_C1 = math.sqrt(2.0 / math.pi)   # tanh-GELU inner scale
_C2 = 0.044715 * _C1             # folded cubic coefficient


def _gelu_tanh(x):
    # tanh-approximate GELU, Horner form with 0.5 folded:
    #   gelu(x) ~= 0.5*x + 0.5*x * tanh(x*(c1 + c2*x^2))
    # tanh goes to the EUP slot; ~7 VALU ops/element (vs ~10+ for the naive form / erf poly).
    hx = 0.5 * x
    inner = x * (_C1 + _C2 * (x * x))
    return hx + hx * jnp.tanh(inner)


def _gelu_erf(x):
    # torch nn.GELU() default (exact, erf-based) -- host reference only.
    return 0.5 * x * (1.0 + lax.erf(x * (1.0 / math.sqrt(2.0))))


def mymlp_kernel(xt_ref,
                 w0_ref, b0_ref,
                 w1_ref, b1_ref,
                 w2_ref, b2_ref,
                 w3_ref, b3_ref,
                 wo_ref, bo_ref,
                 out_ref):
    # layer 0: Linear(3 -> 128) as an aligned (tb, 8) @ (8, 128) f32 dot (zero-padded K), + GELU.
    h = _gelu_tanh(
        jnp.dot(xt_ref[...], w0_ref[...], preferred_element_type=jnp.float32) + b0_ref[...]
    )
    # 3 residual Blocks: h + GELU(Linear_128->128(h))   (add_t_emb=False, concat_t_emb=False)
    # bf16 MXU operands, f32 accumulation; the residual stream stays f32.
    for w_ref, b_ref in ((w1_ref, b1_ref), (w2_ref, b2_ref), (w3_ref, b3_ref)):
        pre = jnp.dot(h.astype(jnp.bfloat16), w_ref[...],
                      preferred_element_type=jnp.float32) + b_ref[...]
        h = h + _gelu_tanh(pre)
    # final layer: Linear(128 -> 2) zero-padded to 128 output lanes (lane-dense store).
    out_ref[...] = (
        jnp.dot(h.astype(jnp.bfloat16), wo_ref[...],
                preferred_element_type=jnp.float32) + bo_ref[...]
    )


def _round_up(n, m):
    return ((n + m - 1) // m) * m


def mymlp_forward(t, x, params, *, tile_batch=2048):
    """t: (B,) or (B,1) float; x: (B, 2) float. Returns (B, 2) float32."""
    w0, b0, w1, b1, w2, b2, w3, b3, wo, bo = params
    B = x.shape[0]

    # --- wrapper-side glue (cheap, outside the kernel) ---
    t2 = jnp.reshape(t, (B, 1)).astype(jnp.float32)                     # t.unsqueeze(1)
    xt = jnp.concatenate(                                               # packed [x0, x1, t, 0..0]
        [x.astype(jnp.float32), t2, jnp.zeros((B, PACK - CONCAT), jnp.float32)], axis=-1)

    # layer-0 weight: zero-pad K (3 -> 8); stays f32 (tiny, preserves input precision).
    w0p = jnp.concatenate(
        [w0.astype(jnp.float32), jnp.zeros((PACK - CONCAT, HIDDEN), jnp.float32)], axis=0)
    # hidden-layer weights in bf16 (MXU-native, halves weight VMEM), biases f32.
    w1b, w2b, w3b = (w.astype(jnp.bfloat16) for w in (w1, w2, w3))
    # final weight/bias zero-padded to 128 output lanes (lane-dense store), weight bf16.
    wop = jnp.zeros((HIDDEN, OUT_PAD), jnp.float32).at[:, :OUT_DIM].set(
        wo.astype(jnp.float32)).astype(jnp.bfloat16)
    bop = jnp.zeros((1, OUT_PAD), jnp.float32).at[:, :OUT_DIM].set(bo.astype(jnp.float32))
    b0f, b1f, b2f, b3f = (b.astype(jnp.float32) for b in (b0, b1, b2, b3))

    # --- batch tiling: multiple of 8 sublanes, >= 2 tiles when possible (v7x megacore) ---
    B8 = _round_up(B, 8)
    tb = min(int(tile_batch), B8)
    if B8 >= 16 and tb >= B8:
        tb = _round_up((B8 + 1) // 2, 8)     # split into (at least) 2 tiles
    tb = _round_up(tb, 8)
    Bp = _round_up(B, tb)
    if Bp != B:
        xt = jnp.pad(xt, ((0, Bp - B), (0, 0)))
    grid = (Bp // tb,)

    def tile_spec(shape):      # batch-tiled input/output blocks
        return pl.BlockSpec(shape, lambda i: (i, 0))

    def resident(shape):       # constant block index -> stays VMEM-resident across grid steps
        return pl.BlockSpec(shape, lambda i: (0, 0))

    cost = pl.CostEstimate(
        flops=2 * Bp * (PACK * HIDDEN + NUM_BLOCKS * HIDDEN * HIDDEN + HIDDEN * OUT_PAD),
        transcendentals=Bp * HIDDEN * (NUM_BLOCKS + 1),                 # one tanh per GELU elem
        bytes_accessed=(Bp * PACK * 4 + Bp * OUT_PAD * 4               # input + padded output
                        + PACK * HIDDEN * 4 + HIDDEN * 4               # w0p, b0
                        + NUM_BLOCKS * (HIDDEN * HIDDEN * 2 + HIDDEN * 4)
                        + HIDDEN * OUT_PAD * 2 + OUT_PAD * 4),         # wop, bop
    )

    out = pl.pallas_call(
        mymlp_kernel,
        out_shape=jax.ShapeDtypeStruct((Bp, OUT_PAD), jnp.float32),
        grid=grid,
        in_specs=[
            tile_spec((tb, PACK)),
            resident((PACK, HIDDEN)), resident((1, HIDDEN)),
            resident((HIDDEN, HIDDEN)), resident((1, HIDDEN)),
            resident((HIDDEN, HIDDEN)), resident((1, HIDDEN)),
            resident((HIDDEN, HIDDEN)), resident((1, HIDDEN)),
            resident((HIDDEN, OUT_PAD)), resident((1, OUT_PAD)),
        ],
        out_specs=tile_spec((tb, OUT_PAD)),
        compiler_params=pltpu.CompilerParams(
            dimension_semantics=("parallel",),      # megacore: batch tiles shard across TCs
            vmem_limit_bytes=32 * 1024 * 1024,      # safe scoped limit on v5e/v6e/v7x
        ),
        cost_estimate=cost,
    )(xt, w0p, b0f, w1b, b1f, w2b, b2f, w3b, b3f, wop, bop)
    return out[:B, :OUT_DIM]


def init_params(key):
    """Deterministic init mimicking torch.nn.Linear (uniform +-1/sqrt(fan_in)).
    Weights stored as (in, out) so the kernel computes x @ W + b."""
    def linear(k, fan_in, fan_out):
        kw, kb = jax.random.split(k)
        bound = 1.0 / math.sqrt(fan_in)
        w = jax.random.uniform(kw, (fan_in, fan_out), jnp.float32, -bound, bound)
        b = jax.random.uniform(kb, (1, fan_out), jnp.float32, -bound, bound)
        return w, b

    keys = jax.random.split(key, 5)
    w0, b0 = linear(keys[0], CONCAT, HIDDEN)    # Linear(3, 128)
    w1, b1 = linear(keys[1], HIDDEN, HIDDEN)    # Block 1 ff
    w2, b2 = linear(keys[2], HIDDEN, HIDDEN)    # Block 2 ff
    w3, b3 = linear(keys[3], HIDDEN, HIDDEN)    # Block 3 ff
    wo, bo = linear(keys[4], HIDDEN, OUT_DIM)   # final Linear(128, 2)  (see TODO above)
    return (w0, b0, w1, b1, w2, b2, w3, b3, wo, bo)


def mymlp_reference(t, x, params, *, exact_gelu=False):
    """Pure-JAX reference of the PyTorch forward (f32 matmuls throughout)."""
    w0, b0, w1, b1, w2, b2, w3, b3, wo, bo = params
    gelu = _gelu_erf if exact_gelu else _gelu_tanh
    hp = lax.Precision.HIGHEST
    h = jnp.concatenate(
        [x.astype(jnp.float32), jnp.reshape(t, (-1, 1)).astype(jnp.float32)], axis=-1)
    h = gelu(jnp.dot(h, w0, precision=hp) + b0)
    for w, b in ((w1, b1), (w2, b2), (w3, b3)):
        h = h + gelu(jnp.dot(h, w, precision=hp) + b)
    return jnp.dot(h, wo, precision=hp) + bo


if __name__ == "__main__":
    key = jax.random.PRNGKey(0)
    k_params, k_x, k_t = jax.random.split(key, 3)

    B = 200   # not a tile multiple -> exercises pad/slice; splits into 2 tiles (v7x megacore)
    params = init_params(k_params)
    x = jax.random.normal(k_x, (B, INPUT_DIM), jnp.float32)
    t = jax.random.uniform(k_t, (B,), jnp.float32, 0.0, 1.0)   # diffusion timestep

    out = jax.block_until_ready(mymlp_forward(t, x, params))
    assert out.shape == (B, OUT_DIM)

    ref_same = mymlp_reference(t, x, params, exact_gelu=False)   # same GELU, f32 matmuls
    ref_torch = mymlp_reference(t, x, params, exact_gelu=True)   # torch nn.GELU (erf) numerics
    err_same = float(jnp.max(jnp.abs(out - ref_same)))
    err_torch = float(jnp.max(jnp.abs(out - ref_torch)))
    # bf16 MXU operands add ~1e-2 absolute error on top of the tanh-GELU approximation.
    assert jnp.allclose(out, ref_same, atol=5e-2, rtol=5e-2), (
        f"mismatch vs tanh-GELU/f32 reference: max abs err {err_same}")
    assert jnp.allclose(out, ref_torch, atol=6e-2, rtol=6e-2), (
        f"mismatch vs exact-GELU/f32 reference: max abs err {err_torch}")
    print("KERNEL_OK")
</pallas_src>

<mosaic_0001>
module attributes {stable_mosaic.version = 11 : i64} {
  func.func @mymlp_kernel(%arg0: i32, %arg1: memref<104x8xf32, #tpu.memory_space<vmem>>, %arg2: memref<8x128xf32, #tpu.memory_space<vmem>>, %arg3: memref<1x128xf32, #tpu.memory_space<vmem>>, %arg4: memref<128x128xbf16, #tpu.memory_space<vmem>>, %arg5: memref<1x128xf32, #tpu.memory_space<vmem>>, %arg6: memref<128x128xbf16, #tpu.memory_space<vmem>>, %arg7: memref<1x128xf32, #tpu.memory_space<vmem>>, %arg8: memref<128x128xbf16, #tpu.memory_space<vmem>>, %arg9: memref<1x128xf32, #tpu.memory_space<vmem>>, %arg10: memref<128x128xbf16, #tpu.memory_space<vmem>>, %arg11: memref<1x128xf32, #tpu.memory_space<vmem>>, %arg12: memref<104x128xf32, #tpu.memory_space<vmem>>) attributes {dimension_semantics = [#tpu.dimension_semantics<parallel>], iteration_bounds = array<i64: 2>, scalar_prefetch = 0 : i64, scratch_operands = 0 : i64, tpu.core_type = #tpu.core_type<tc>, window_params = [{transform_indices = @transform_0, window_bounds = array<i64: 104, 8>}, {pipeline_mode = #tpu.pipeline_mode<synchronous>, transform_indices = @transform_1, window_bounds = array<i64: 8, 128>}, {pipeline_mode = #tpu.pipeline_mode<synchronous>, transform_indices = @transform_2, window_bounds = array<i64: 1, 128>}, {pipeline_mode = #tpu.pipeline_mode<synchronous>, transform_indices = @transform_3, window_bounds = array<i64: 128, 128>}, {pipeline_mode = #tpu.pipeline_mode<synchronous>, transform_indices = @transform_4, window_bounds = array<i64: 1, 128>}, {pipeline_mode = #tpu.pipeline_mode<synchronous>, transform_indices = @transform_5, window_bounds = array<i64: 128, 128>}, {pipeline_mode = #tpu.pipeline_mode<synchronous>, transform_indices = @transform_6, window_bounds = array<i64: 1, 128>}, {pipeline_mode = #tpu.pipeline_mode<synchronous>, transform_indices = @transform_7, window_bounds = array<i64: 128, 128>}, {pipeline_mode = #tpu.pipeline_mode<synchronous>, transform_indices = @transform_8, window_bounds = array<i64: 1, 128>}, {pipeline_mode = #tpu.pipeline_mode<synchronous>, transform_indices = @transform_9, window_bounds = array<i64: 128, 128>}, {pipeline_mode = #tpu.pipeline_mode<synchronous>, transform_indices = @transform_10, window_bounds = array<i64: 1, 128>}, {transform_indices = @transform_11, window_bounds = array<i64: 104, 128>}]} {
    %c0 = arith.constant 0 : index
    %c0_0 = arith.constant 0 : index
    %0 = vector.load %arg1[%c0, %c0_0] : memref<104x8xf32, #tpu.memory_space<vmem>>, vector<104x8xf32>
    %c0_1 = arith.constant 0 : index
    %c0_2 = arith.constant 0 : index
    %1 = vector.load %arg2[%c0_1, %c0_2] : memref<8x128xf32, #tpu.memory_space<vmem>>, vector<8x128xf32>
    %cst = arith.constant dense<0.000000e+00> : vector<104x128xf32>
    %2 = tpu.matmul %0, %1, %cst {dimension_numbers = #tpu.dot_dimension_numbers<[1], [0], [0], [1], [0, 0, 1, 1], [], []>} : vector<104x8xf32>, vector<8x128xf32>, vector<104x128xf32> -> vector<104x128xf32>
    %c0_3 = arith.constant 0 : index
    %c0_4 = arith.constant 0 : index
    %3 = vector.load %arg3[%c0_3, %c0_4] : memref<1x128xf32, #tpu.memory_space<vmem>>, vector<1x128xf32>
    %4 = vector.broadcast %3 : vector<1x128xf32> to vector<104x128xf32>
    %5 = arith.addf %2, %4 : vector<104x128xf32>
    %cst_5 = arith.constant 5.000000e-01 : f32
    %6 = vector.broadcast %cst_5 : f32 to vector<104x128xf32>
    %7 = arith.mulf %6, %5 : vector<104x128xf32>
    %8 = arith.mulf %5, %5 : vector<104x128xf32>
    %cst_6 = arith.constant 0.0356774069 : f32
    %9 = vector.broadcast %cst_6 : f32 to vector<104x128xf32>
    %10 = arith.mulf %9, %8 : vector<104x128xf32>
    %cst_7 = arith.constant 0.797884583 : f32
    %11 = vector.broadcast %cst_7 : f32 to vector<104x128xf32>
    %12 = arith.addf %11, %10 : vector<104x128xf32>
    %13 = arith.mulf %5, %12 : vector<104x128xf32>
    %14 = math.tanh %13 : vector<104x128xf32>
    %15 = arith.mulf %7, %14 : vector<104x128xf32>
    %16 = arith.addf %7, %15 : vector<104x128xf32>
    %17 = arith.truncf %16 : vector<104x128xf32> to vector<104x128xbf16>
    %c0_8 = arith.constant 0 : index
    %c0_9 = arith.constant 0 : index
    %18 = vector.load %arg4[%c0_8, %c0_9] : memref<128x128xbf16, #tpu.memory_space<vmem>>, vector<128x128xbf16>
    %cst_10 = arith.constant dense<0.000000e+00> : vector<104x128xf32>
    %19 = tpu.matmul %17, %18, %cst_10 {dimension_numbers = #tpu.dot_dimension_numbers<[1], [0], [0], [1], [0, 0, 1, 1], [], []>} : vector<104x128xbf16>, vector<128x128xbf16>, vector<104x128xf32> -> vector<104x128xf32>
    %c0_11 = arith.constant 0 : index
    %c0_12 = arith.constant 0 : index
    %20 = vector.load %arg5[%c0_11, %c0_12] : memref<1x128xf32, #tpu.memory_space<vmem>>, vector<1x128xf32>
    %21 = vector.broadcast %20 : vector<1x128xf32> to vector<104x128xf32>
    %22 = arith.addf %19, %21 : vector<104x128xf32>
    %cst_13 = arith.constant 5.000000e-01 : f32
    %23 = vector.broadcast %cst_13 : f32 to vector<104x128xf32>
    %24 = arith.mulf %23, %22 : vector<104x128xf32>
    %25 = arith.mulf %22, %22 : vector<104x128xf32>
    %cst_14 = arith.constant 0.0356774069 : f32
    %26 = vector.broadcast %cst_14 : f32 to vector<104x128xf32>
    %27 = arith.mulf %26, %25 : vector<104x128xf32>
    %cst_15 = arith.constant 0.797884583 : f32
    %28 = vector.broadcast %cst_15 : f32 to vector<104x128xf32>
    %29 = arith.addf %28, %27 : vector<104x128xf32>
    %30 = arith.mulf %22, %29 : vector<104x128xf32>
    %31 = math.tanh %30 : vector<104x128xf32>
    %32 = arith.mulf %24, %31 : vector<104x128xf32>
    %33 = arith.addf %24, %32 : vector<104x128xf32>
    %34 = arith.addf %16, %33 : vector<104x128xf32>
    %35 = arith.truncf %34 : vector<104x128xf32> to vector<104x128xbf16>
    %c0_16 = arith.constant 0 : index
    %c0_17 = arith.constant 0 : index
    %36 = vector.load %arg6[%c0_16, %c0_17] : memref<128x128xbf16, #tpu.memory_space<vmem>>, vector<128x128xbf16>
    %cst_18 = arith.constant dense<0.000000e+00> : vector<104x128xf32>
    %37 = tpu.matmul %35, %36, %cst_18 {dimension_numbers = #tpu.dot_dimension_numbers<[1], [0], [0], [1], [0, 0, 1, 1], [], []>} : vector<104x128xbf16>, vector<128x128xbf16>, vector<104x128xf32> -> vector<104x128xf32>
    %c0_19 = arith.constant 0 : index
    %c0_20 = arith.constant 0 : index
    %38 = vector.load %arg7[%c0_19, %c0_20] : memref<1x128xf32, #tpu.memory_space<vmem>>, vector<1x128xf32>
    %39 = vector.broadcast %38 : vector<1x128xf32> to vector<104x128xf32>
    %40 = arith.addf %37, %39 : vector<104x128xf32>
    %cst_21 = arith.constant 5.000000e-01 : f32
    %41 = vector.broadcast %cst_21 : f32 to vector<104x128xf32>
    %42 = arith.mulf %41, %40 : vector<104x128xf32>
    %43 = arith.mulf %40, %40 : vector<104x128xf32>
    %cst_22 = arith.constant 0.0356774069 : f32
    %44 = vector.broadcast %cst_22 : f32 to vector<104x128xf32>
    %45 = arith.mulf %44, %43 : vector<104x128xf32>
    %cst_23 = arith.constant 0.797884583 : f32
    %46 = vector.broadcast %cst_23 : f32 to vector<104x128xf32>
    %47 = arith.addf %46, %45 : vector<104x128xf32>
    %48 = arith.mulf %40, %47 : vector<104x128xf32>
    %49 = math.tanh %48 : vector<104x128xf32>
    %50 = arith.mulf %42, %49 : vector<104x128xf32>
    %51 = arith.addf %42, %50 : vector<104x128xf32>
    %52 = arith.addf %34, %51 : vector<104x128xf32>
    %53 = arith.truncf %52 : vector<104x128xf32> to vector<104x128xbf16>
    %c0_24 = arith.constant 0 : index
    %c0_25 = arith.constant 0 : index
    %54 = vector.load %arg8[%c0_24, %c0_25] : memref<128x128xbf16, #tpu.memory_space<vmem>>, vector<128x128xbf16>
    %cst_26 = arith.constant dense<0.000000e+00> : vector<104x128xf32>
    %55 = tpu.matmul %53, %54, %cst_26 {dimension_numbers = #tpu.dot_dimension_numbers<[1], [0], [0], [1], [0, 0, 1, 1], [], []>} : vector<104x128xbf16>, vector<128x128xbf16>, vector<104x128xf32> -> vector<104x128xf32>
    %c0_27 = arith.constant 0 : index
    %c0_28 = arith.constant 0 : index
    %56 = vector.load %arg9[%c0_27, %c0_28] : memref<1x128xf32, #tpu.memory_space<vmem>>, vector<1x128xf32>
    %57 = vector.broadcast %56 : vector<1x128xf32> to vector<104x128xf32>
    %58 = arith.addf %55, %57 : vector<104x128xf32>
    %cst_29 = arith.constant 5.000000e-01 : f32
    %59 = vector.broadcast %cst_29 : f32 to vector<104x128xf32>
    %60 = arith.mulf %59, %58 : vector<104x128xf32>
    %61 = arith.mulf %58, %58 : vector<104x128xf32>
    %cst_30 = arith.constant 0.0356774069 : f32
    %62 = vector.broadcast %cst_30 : f32 to vector<104x128xf32>
    %63 = arith.mulf %62, %61 : vector<104x128xf32>
    %cst_31 = arith.constant 0.797884583 : f32
    %64 = vector.broadcast %cst_31 : f32 to vector<104x128xf32>
    %65 = arith.addf %64, %63 : vector<104x128xf32>
    %66 = arith.mulf %58, %65 : vector<104x128xf32>
    %67 = math.tanh %66 : vector<104x128xf32>
    %68 = arith.mulf %60, %67 : vector<104x128xf32>
    %69 = arith.addf %60, %68 : vector<104x128xf32>
    %70 = arith.addf %52, %69 : vector<104x128xf32>
    %71 = arith.truncf %70 : vector<104x128xf32> to vector<104x128xbf16>
    %c0_32 = arith.constant 0 : index
    %c0_33 = arith.constant 0 : index
    %72 = vector.load %arg10[%c0_32, %c0_33] : memref<128x128xbf16, #tpu.memory_space<vmem>>, vector<128x128xbf16>
    %cst_34 = arith.constant dense<0.000000e+00> : vector<104x128xf32>
    %73 = tpu.matmul %71, %72, %cst_34 {dimension_numbers = #tpu.dot_dimension_numbers<[1], [0], [0], [1], [0, 0, 1, 1], [], []>} : vector<104x128xbf16>, vector<128x128xbf16>, vector<104x128xf32> -> vector<104x128xf32>
    %c0_35 = arith.constant 0 : index
    %c0_36 = arith.constant 0 : index
    %74 = vector.load %arg11[%c0_35, %c0_36] : memref<1x128xf32, #tpu.memory_space<vmem>>, vector<1x128xf32>
    %75 = vector.broadcast %74 : vector<1x128xf32> to vector<104x128xf32>
    %76 = arith.addf %73, %75 : vector<104x128xf32>
    %c0_37 = arith.constant 0 : index
    %c0_38 = arith.constant 0 : index
    %77 = vector.load %arg12[%c0_37, %c0_38] : memref<104x128xf32, #tpu.memory_space<vmem>>, vector<104x128xf32>
    tpu.vector_store %arg12[%c0_37, %c0_38], %76 {strides = array<i32>} : memref<104x128xf32, #tpu.memory_space<vmem>>, vector<104x128xf32>,
    return
  }
  func.func @transform_0(%arg0: i32) -> (i32, i32) {
    %c0_i32 = arith.constant 0 : i32
    %c0_i32_0 = arith.constant 0 : i32
    return %arg0, %c0_i32 : i32, i32
  }
  func.func @transform_1(%arg0: i32) -> (i32, i32) {
    %c0_i32 = arith.constant 0 : i32
    %c0_i32_0 = arith.constant 0 : i32
    %c0_i32_1 = arith.constant 0 : i32
    return %c0_i32, %c0_i32_0 : i32, i32
  }
  func.func @transform_2(%arg0: i32) -> (i32, i32) {
    %c0_i32 = arith.constant 0 : i32
    %c0_i32_0 = arith.constant 0 : i32
    %c0_i32_1 = arith.constant 0 : i32
    return %c0_i32, %c0_i32_0 : i32, i32
  }
  func.func @transform_3(%arg0: i32) -> (i32, i32) {
    %c0_i32 = arith.constant 0 : i32
    %c0_i32_0 = arith.constant 0 : i32
    %c0_i32_1 = arith.constant 0 : i32
    return %c0_i32, %c0_i32_0 : i32, i32
  }
  func.func @transform_4(%arg0: i32) -> (i32, i32) {
    %c0_i32 = arith.constant 0 : i32
    %c0_i32_0 = arith.constant 0 : i32
    %c0_i32_1 = arith.constant 0 : i32
    return %c0_i32, %c0_i32_0 : i32, i32
  }
  func.func @transform_5(%arg0: i32) -> (i32, i32) {
    %c0_i32 = arith.constant 0 : i32
    %c0_i32_0 = arith.constant 0 : i32
    %c0_i32_1 = arith.constant 0 : i32
    return %c0_i32, %c0_i32_0 : i32, i32
  }
  func.func @transform_6(%arg0: i32) -> (i32, i32) {
    %c0_i32 = arith.constant 0 : i32
    %c0_i32_0 = arith.constant 0 : i32
    %c0_i32_1 = arith.constant 0 : i32
    return %c0_i32, %c0_i32_0 : i32, i32
  }
  func.func @transform_7(%arg0: i32) -> (i32, i32) {
    %c0_i32 = arith.constant 0 : i32
    %c0_i32_0 = arith.constant 0 : i32
    %c0_i32_1 = arith.constant 0 : i32
    return %c0_i32, %c0_i32_0 : i32, i32
  }
  func.func @transform_8(%arg0: i32) -> (i32, i32) {
    %c0_i32 = arith.constant 0 : i32
    %c0_i32_0 = arith.constant 0 : i32
    %c0_i32_1 = arith.constant 0 : i32
    return %c0_i32, %c0_i32_0 : i32, i32
  }
  func.func @transform_9(%arg0: i32) -> (i32, i32) {
    %c0_i32 = arith.constant 0 : i32
    %c0_i32_0 = arith.constant 0 : i32
    %c0_i32_1 = arith.constant 0 : i32
    return %c0_i32, %c0_i32_0 : i32, i32
  }
  func.func @transform_10(%arg0: i32) -> (i32, i32) {
    %c0_i32 = arith.constant 0 : i32
    %c0_i32_0 = arith.constant 0 : i32
    %c0_i32_1 = arith.constant 0 : i32
    return %c0_i32, %c0_i32_0 : i32, i32
  }
  func.func @transform_11(%arg0: i32) -> (i32, i32) {
    %c0_i32 = arith.constant 0 : i32
    %c0_i32_0 = arith.constant 0 : i32
    return %arg0, %c0_i32 : i32, i32
  }
}

</mosaic_0001>

<llo_original>
// kernel: tpu_custom_call.1
$region0: #{tpu_custom_call.1}
  #allocation0 [shape = 'u32[]', space=smem, size = 0x4, offset = 0x4, fixed_abs, tag = 'smem constant byte address 0x4 - core index']
  #allocation1 [shape = 'u32[144,128]{1,0:T(1,128)}', space=vmem, size = 0x12000, scoped, tag = 'internal scratch']
  %s0 = inlined_call_operand.vmem [shape: f32[208,8], index: 0, kind: input, shape index: {}]
  %s1 = inlined_call_operand.vmem [shape: f32[8,128], index: 1, kind: input, shape index: {}]
  %s2 = inlined_call_operand.vmem [shape: f32[1,128], index: 2, kind: input, shape index: {}]
  %s3 = inlined_call_operand.vmem [shape: bf16[128,128], index: 3, kind: input, shape index: {}]
  %s4 = inlined_call_operand.vmem [shape: f32[1,128], index: 4, kind: input, shape index: {}]
  %s5 = inlined_call_operand.vmem [shape: bf16[128,128], index: 5, kind: input, shape index: {}]
  %s6 = inlined_call_operand.vmem [shape: f32[1,128], index: 6, kind: input, shape index: {}]
  %s7 = inlined_call_operand.vmem [shape: bf16[128,128], index: 7, kind: input, shape index: {}]
  %s8 = inlined_call_operand.vmem [shape: f32[1,128], index: 8, kind: input, shape index: {}]
  %s9 = inlined_call_operand.hbm [shape: bf16[128,128], index: 9, kind: input, shape index: {}]
  %s10 = inlined_call_operand.vmem [shape: f32[1,128], index: 10, kind: input, shape index: {}]
  %s11 = inlined_call_operand.hbm [shape: f32[208,128], index: 11, kind: output, shape index: {}]
  %s12 = sld [smem:[#allocation0]]
  $region81: #{tpu_custom_call.1} parent=0
    _
  %s14 = ssub.s32 1, %s12
  %s15 = scalar_select 0, %s14, %s12
  $region1: #{tpu_custom_call.1} parent=0
    #allocation2 [shape = 'u8[32768]{0}', space=vmem, size = 0x8000, scoped, tag = 'input window, operand 9, single buffered']
    #allocation3 [shape = 's32[2]{0}', space=sflag, size = 0x8, scoped, tag = 'scoped memory for tpu_custom_call.1']
    #allocation4 [shape = 's32[2]{0}', space=sflag, size = 0x8, scoped, tag = 'scoped memory for tpu_custom_call.1']
    #allocation5 [shape = 'u8[106496]{0}', space=vmem, size = 0x1a000, scoped, tag = 'output window, operand 0']
    %16 = vsyncpa [#allocation3], 0
    %17 = vsyncpa [#allocation4], 0
    %s18 = scalar_lea.sflag [#allocation4], 1
    %19 = vsyncpa %s18, 0
    loop: start=0, step=1, limit=4
    $region2: #{tpu_custom_call.1} parent=1 // loop_pre_header
      _
    $region3: #{tpu_custom_call.1} parent=1 // loop_header
      %s21 = sphi 0, %s25
      %p22 = scmp.ge.s32.totalorder %s21, 4
      %s31 = sphi 0, %s33
      %s34 = sphi 0, %s31
      %s35 = sphi 0, %s34
      %s51 = sphi 0, %s35
      %s55 = sphi 0, %s55
      %s57 = sphi 0, %s55
      %s58 = sphi 0, %s57
      %s72 = sphi 0, %s58
      %s76 = sphi 0, %s76
      %s78 = sphi 0, %s76
      %s79 = sphi 0, %s78
      %s93 = sphi 0, %s79
      %s97 = sphi 0, %s97
      %s99 = sphi 0, %s97
      %s100 = sphi 0, %s99
      %s114 = sphi 0, %s100
      %s118 = sphi 0, %s118
      %s120 = sphi 0, %s118
      %s121 = sphi 0, %s120
      %s135 = sphi 0, %s121
      %s139 = sphi 0, %s139
      %s141 = sphi 0, %s139
      %s142 = sphi 0, %s141
      %s156 = sphi 0, %s142
      %s160 = sphi 0, %s160
      %s162 = sphi 0, %s160
      %s163 = sphi 0, %s162
      %s177 = sphi 0, %s163
      %s181 = sphi 0, %s181
      %s183 = sphi 0, %s181
      %s184 = sphi 0, %s183
      %s198 = sphi 0, %s184
      %s202 = sphi 0, %s202
      %s204 = sphi 0, %s202
      %s205 = sphi 0, %s204
      %s219 = sphi 0, %s205
      %s223 = sphi 0, %s223
      %s225 = sphi 0, %s223
      %s226 = sphi 0, %s225
      %s240 = sphi 0, %s226
      %s244 = sphi 0, %s244
      %s246 = sphi 0, %s244
      %s247 = sphi 0, %s246
      %s261 = sphi 0, %s247
      %s267 = sphi 0, %s269
      %s270 = sphi 0, %s267
      %s271 = sphi 0, %s270
      %s287 = sphi 0, %s271
    $region4: #{tpu_custom_call.1} parent=1 // loop_header_branch
      %24 = sbr.rel (%p22) target = $region8
    $region5: #{tpu_custom_call.1} parent=1 // loop_body
      %s26 = ssub.s32 %s21, 1
      %s27 = ssub.s32 %s21, 2
      %s28 = sadd.s32 %s21, 1
      %s29 = ssub.s32 %s21, %s28
      %p30 = scmp.eq.s32.totalorder %s29, 0
      %s32 = sadd.s32 %s31, 1
      %s33 = scalar_select %p30, %s31, %s32
      %p36 = pneg %p30
      %p37 = scmp.eq.s32.totalorder %s21, 1
      %p38 = por %p36, %p37
      %p39 = scmp.ne.s32.totalorder %s31, %s34
      %p40 = scmp.eq.s32.totalorder %s21, 0
      %p41 = por %p39, %p40
      %p42 = scmp.ne.s32.totalorder %s31, %s34
      %p43 = scmp.eq.s32.totalorder %s26, 1
      %p44 = por %p42, %p43
      %p45 = scmp.ne.s32.totalorder %s34, %s35
      %p46 = scmp.eq.s32.totalorder %s26, 0
      %p47 = por %p45, %p46
      %p48 = scmp.ne.s32.totalorder %s34, %s35
      %p49 = scmp.eq.s32.totalorder %s27, 1
      %p50 = por %p48, %p49
      %p52 = scmp.ne.s32.totalorder %s35, %s51
      %p53 = scmp.eq.s32.totalorder %s27, 0
      %p54 = por %p52, %p53
      %s56 = sadd.s32 %s55, 1
      %p59 = scmp.eq.s32.totalorder %s21, 1
      %p60 = scmp.ne.s32.totalorder %s55, %s57
      %p61 = scmp.eq.s32.totalorder %s21, 0
      %p62 = por %p60, %p61
      %p63 = scmp.ne.s32.totalorder %s55, %s57
      %p64 = scmp.eq.s32.totalorder %s26, 1
      %p65 = por %p63, %p64
      %p66 = scmp.ne.s32.totalorder %s57, %s58
      %p67 = scmp.eq.s32.totalorder %s26, 0
      %p68 = por %p66, %p67
      %p69 = scmp.ne.s32.totalorder %s57, %s58
      %p70 = scmp.eq.s32.totalorder %s27, 1
      %p71 = por %p69, %p70
      %p73 = scmp.ne.s32.totalorder %s58, %s72
      %p74 = scmp.eq.s32.totalorder %s27, 0
      %p75 = por %p73, %p74
      %s77 = sadd.s32 %s76, 1
      %p80 = scmp.eq.s32.totalorder %s21, 1
      %p81 = scmp.ne.s32.totalorder %s76, %s78
      %p82 = scmp.eq.s32.totalorder %s21, 0
      %p83 = por %p81, %p82
      %p84 = scmp.ne.s32.totalorder %s76, %s78
      %p85 = scmp.eq.s32.totalorder %s26, 1
      %p86 = por %p84, %p85
      %p87 = scmp.ne.s32.totalorder %s78, %s79
      %p88 = scmp.eq.s32.totalorder %s26, 0
      %p89 = por %p87, %p88
      %p90 = scmp.ne.s32.totalorder %s78, %s79
      %p91 = scmp.eq.s32.totalorder %s27, 1
      %p92 = por %p90, %p91
      %p94 = scmp.ne.s32.totalorder %s79, %s93
      %p95 = scmp.eq.s32.totalorder %s27, 0
      %p96 = por %p94, %p95
      %s98 = sadd.s32 %s97, 1
      %p101 = scmp.eq.s32.totalorder %s21, 1
      %p102 = scmp.ne.s32.totalorder %s97, %s99
      %p103 = scmp.eq.s32.totalorder %s21, 0
      %p104 = por %p102, %p103
      %p105 = scmp.ne.s32.totalorder %s97, %s99
      %p106 = scmp.eq.s32.totalorder %s26, 1
      %p107 = por %p105, %p106
      %p108 = scmp.ne.s32.totalorder %s99, %s100
      %p109 = scmp.eq.s32.totalorder %s26, 0
      %p110 = por %p108, %p109
      %p111 = scmp.ne.s32.totalorder %s99, %s100
      %p112 = scmp.eq.s32.totalorder %s27, 1
      %p113 = por %p111, %p112
      %p115 = scmp.ne.s32.totalorder %s100, %s114
      %p116 = scmp.eq.s32.totalorder %s27, 0
      %p117 = por %p115, %p116
      %s119 = sadd.s32 %s118, 1
      %p122 = scmp.eq.s32.totalorder %s21, 1
      %p123 = scmp.ne.s32.totalorder %s118, %s120
      %p124 = scmp.eq.s32.totalorder %s21, 0
      %p125 = por %p123, %p124
      %p126 = scmp.ne.s32.totalorder %s118, %s120
      %p127 = scmp.eq.s32.totalorder %s26, 1
      %p128 = por %p126, %p127
      %p129 = scmp.ne.s32.totalorder %s120, %s121
      %p130 = scmp.eq.s32.totalorder %s26, 0
      %p131 = por %p129, %p130
      %p132 = scmp.ne.s32.totalorder %s120, %s121
      %p133 = scmp.eq.s32.totalorder %s27, 1
      %p134 = por %p132, %p133
      %p136 = scmp.ne.s32.totalorder %s121, %s135
      %p137 = scmp.eq.s32.totalorder %s27, 0
      %p138 = por %p136, %p137
      %s140 = sadd.s32 %s139, 1
      %p143 = scmp.eq.s32.totalorder %s21, 1
      %p144 = scmp.ne.s32.totalorder %s139, %s141
      %p145 = scmp.eq.s32.totalorder %s21, 0
      %p146 = por %p144, %p145
      %p147 = scmp.ne.s32.totalorder %s139, %s141
      %p148 = scmp.eq.s32.totalorder %s26, 1
      %p149 = por %p147, %p148
      %p150 = scmp.ne.s32.totalorder %s141, %s142
      %p151 = scmp.eq.s32.totalorder %s26, 0
      %p152 = por %p150, %p151
      %p153 = scmp.ne.s32.totalorder %s141, %s142
      %p154 = scmp.eq.s32.totalorder %s27, 1
      %p155 = por %p153, %p154
      %p157 = scmp.ne.s32.totalorder %s142, %s156
      %p158 = scmp.eq.s32.totalorder %s27, 0
      %p159 = por %p157, %p158
      %s161 = sadd.s32 %s160, 1
      %p164 = scmp.eq.s32.totalorder %s21, 1
      %p165 = scmp.ne.s32.totalorder %s160, %s162
      %p166 = scmp.eq.s32.totalorder %s21, 0
      %p167 = por %p165, %p166
      %p168 = scmp.ne.s32.totalorder %s160, %s162
      %p169 = scmp.eq.s32.totalorder %s26, 1
      %p170 = por %p168, %p169
      %p171 = scmp.ne.s32.totalorder %s162, %s163
      %p172 = scmp.eq.s32.totalorder %s26, 0
      %p173 = por %p171, %p172
      %p174 = scmp.ne.s32.totalorder %s162, %s163
      %p175 = scmp.eq.s32.totalorder %s27, 1
      %p176 = por %p174, %p175
      %p178 = scmp.ne.s32.totalorder %s163, %s177
      %p179 = scmp.eq.s32.totalorder %s27, 0
      %p180 = por %p178, %p179
      %s182 = sadd.s32 %s181, 1
      %p185 = scmp.eq.s32.totalorder %s21, 1
      %p186 = scmp.ne.s32.totalorder %s181, %s183
      %p187 = scmp.eq.s32.totalorder %s21, 0
      %p188 = por %p186, %p187
      %p189 = scmp.ne.s32.totalorder %s181, %s183
      %p190 = scmp.eq.s32.totalorder %s26, 1
      %p191 = por %p189, %p190
      %p192 = scmp.ne.s32.totalorder %s183, %s184
      %p193 = scmp.eq.s32.totalorder %s26, 0
      %p194 = por %p192, %p193
      %p195 = scmp.ne.s32.totalorder %s183, %s184
      %p196 = scmp.eq.s32.totalorder %s27, 1
      %p197 = por %p195, %p196
      %p199 = scmp.ne.s32.totalorder %s184, %s198
      %p200 = scmp.eq.s32.totalorder %s27, 0
      %p201 = por %p199, %p200
      %s203 = sadd.s32 %s202, 1
      %p206 = scmp.eq.s32.totalorder %s21, 1
      %p207 = scmp.ne.s32.totalorder %s202, %s204
      %p208 = scmp.eq.s32.totalorder %s21, 0
      %p209 = por %p207, %p208
      %p210 = scmp.ne.s32.totalorder %s202, %s204
      %p211 = scmp.eq.s32.totalorder %s26, 1
      %p212 = por %p210, %p211
      %p213 = scmp.ne.s32.totalorder %s204, %s205
      %p214 = scmp.eq.s32.totalorder %s26, 0
      %p215 = por %p213, %p214
      %p216 = scmp.ne.s32.totalorder %s204, %s205
      %p217 = scmp.eq.s32.totalorder %s27, 1
      %p218 = por %p216, %p217
      %p220 = scmp.ne.s32.totalorder %s205, %s219
      %p221 = scmp.eq.s32.totalorder %s27, 0
      %p222 = por %p220, %p221
      %s224 = sadd.s32 %s223, 1
      %p227 = scmp.eq.s32.totalorder %s21, 1
      %p228 = scmp.ne.s32.totalorder %s223, %s225
      %p229 = scmp.eq.s32.totalorder %s21, 0
      %p230 = por %p228, %p229
      %p231 = scmp.ne.s32.totalorder %s223, %s225
      %p232 = scmp.eq.s32.totalorder %s26, 1
      %p233 = por %p231, %p232
      %p234 = scmp.ne.s32.totalorder %s225, %s226
      %p235 = scmp.eq.s32.totalorder %s26, 0
      %p236 = por %p234, %p235
      %p237 = scmp.ne.s32.totalorder %s225, %s226
      %p238 = scmp.eq.s32.totalorder %s27, 1
      %p239 = por %p237, %p238
      %p241 = scmp.ne.s32.totalorder %s226, %s240
      %p242 = scmp.eq.s32.totalorder %s27, 0
      %p243 = por %p241, %p242
      %s245 = sadd.s32 %s244, 1
      %p248 = scmp.eq.s32.totalorder %s21, 1
      %p249 = scmp.ne.s32.totalorder %s244, %s246
      %p250 = scmp.eq.s32.totalorder %s21, 0
      %p251 = por %p249, %p250
      %p252 = scmp.ne.s32.totalorder %s244, %s246
      %p253 = scmp.eq.s32.totalorder %s26, 1
      %p254 = por %p252, %p253
      %p255 = scmp.ne.s32.totalorder %s246, %s247
      %p256 = scmp.eq.s32.totalorder %s26, 0
      %p257 = por %p255, %p256
      %p258 = scmp.ne.s32.totalorder %s246, %s247
      %p259 = scmp.eq.s32.totalorder %s27, 1
      %p260 = por %p258, %p259
      %p262 = scmp.ne.s32.totalorder %s247, %s261
      %p263 = scmp.eq.s32.totalorder %s27, 0
      %p264 = por %p262, %p263
      %s265 = ssub.s32 %s21, %s28
      %p266 = scmp.eq.s32.totalorder %s265, 0
      %s268 = sadd.s32 %s267, 1
      %s269 = scalar_select %p266, %s267, %s268
      %p272 = pneg %p266
      %p273 = scmp.eq.s32.totalorder %s21, 1
      %p274 = por %p272, %p273
      %p275 = scmp.ne.s32.totalorder %s267, %s270
      %p276 = scmp.eq.s32.totalorder %s21, 0
      %p277 = por %p275, %p276
      %p278 = scmp.ne.s32.totalorder %s267, %s270
      %p279 = scmp.eq.s32.totalorder %s26, 1
      %p280 = por %p278, %p279
      %p281 = scmp.ne.s32.totalorder %s270, %s271
      %p282 = scmp.eq.s32.totalorder %s26, 0
      %p283 = por %p281, %p282
      %p284 = scmp.ne.s32.totalorder %s270, %s271
      %p285 = scmp.eq.s32.totalorder %s27, 1
      %p286 = por %p284, %p285
      %p288 = scmp.ne.s32.totalorder %s271, %s287
      %p289 = scmp.eq.s32.totalorder %s27, 0
      %p290 = por %p288, %p289
      %p291 = scmp.le.s32.totalorder 1, %s21
      %p292 = scmp.lt.s32.totalorder %s21, 3
      %p293 = pnand %p291, %p292
      %p294 = pneg %p293
      // Predicated region
      $region9: #{tpu_custom_call.1} parent=5 // pred_check
        _
      $region10: #{tpu_custom_call.1} parent=5 // pred_check_branch
        %296 = sbr.rel (%p293) target = $region12
      $region11: #{tpu_custom_call.1} parent=5 // pred_region
        %s297 = ssub.s32 %s21, 1
        // Predicated region
        $region13: #{tpu_custom_call.1} parent=11 // pred_check
          %p298 = pneg %p68
        $region14: #{tpu_custom_call.1} parent=11 // pred_check_branch
          %300 = sbr.rel (%p298) target = $region16
        $region15: #{tpu_custom_call.1} parent=11 // pred_region
          _
        $region16: #{tpu_custom_call.1} parent=11 // pred_fallthru
          _
        // Predicated region
        $region17: #{tpu_custom_call.1} parent=11 // pred_check
          %p301 = pneg %p89
        $region18: #{tpu_custom_call.1} parent=11 // pred_check_branch
          %303 = sbr.rel (%p301) target = $region20
        $region19: #{tpu_custom_call.1} parent=11 // pred_region
          _
        $region20: #{tpu_custom_call.1} parent=11 // pred_fallthru
          _
        // Predicated region
        $region21: #{tpu_custom_call.1} parent=11 // pred_check
          %p304 = pneg %p110
        $region22: #{tpu_custom_call.1} parent=11 // pred_check_branch
          %306 = sbr.rel (%p304) target = $region24
        $region23: #{tpu_custom_call.1} parent=11 // pred_region
          _
        $region24: #{tpu_custom_call.1} parent=11 // pred_fallthru
          _
        // Predicated region
        $region25: #{tpu_custom_call.1} parent=11 // pred_check
          %p307 = pneg %p131
        $region26: #{tpu_custom_call.1} parent=11 // pred_check_branch
          %309 = sbr.rel (%p307) target = $region28
        $region27: #{tpu_custom_call.1} parent=11 // pred_region
          _
        $region28: #{tpu_custom_call.1} parent=11 // pred_fallthru
          _
        // Predicated region
        $region29: #{tpu_custom_call.1} parent=11 // pred_check
          %p310 = pneg %p152
        $region30: #{tpu_custom_call.1} parent=11 // pred_check_branch
          %312 = sbr.rel (%p310) target = $region32
        $region31: #{tpu_custom_call.1} parent=11 // pred_region
          _
        $region32: #{tpu_custom_call.1} parent=11 // pred_fallthru
          _
        // Predicated region
        $region33: #{tpu_custom_call.1} parent=11 // pred_check
          %p313 = pneg %p173
        $region34: #{tpu_custom_call.1} parent=11 // pred_check_branch
          %315 = sbr.rel (%p313) target = $region36
        $region35: #{tpu_custom_call.1} parent=11 // pred_region
          _
        $region36: #{tpu_custom_call.1} parent=11 // pred_fallthru
          _
        // Predicated region
        $region37: #{tpu_custom_call.1} parent=11 // pred_check
          %p316 = pneg %p194
        $region38: #{tpu_custom_call.1} parent=11 // pred_check_branch
          %318 = sbr.rel (%p316) target = $region40
        $region39: #{tpu_custom_call.1} parent=11 // pred_region
          _
        $region40: #{tpu_custom_call.1} parent=11 // pred_fallthru
          _
        // Predicated region
        $region41: #{tpu_custom_call.1} parent=11 // pred_check
          %p319 = pneg %p215
        $region42: #{tpu_custom_call.1} parent=11 // pred_check_branch
          %321 = sbr.rel (%p319) target = $region44
        $region43: #{tpu_custom_call.1} parent=11 // pred_region
          _
        $region44: #{tpu_custom_call.1} parent=11 // pred_fallthru
          _
        // Predicated region
        $region45: #{tpu_custom_call.1} parent=11 // pred_check
          %p322 = pneg %p236
        $region46: #{tpu_custom_call.1} parent=11 // pred_check_branch
          %324 = sbr.rel (%p322) target = $region48
        $region47: #{tpu_custom_call.1} parent=11 // pred_region
          %s326 = ssub.s32 1024, 1024
          %327 = vsyncadd [#allocation3], %s326
          %s328 = sshll.u32 [#allocation2], 4
          %s329 = int_to_ptr.vmem [resolvable:$true] %s328
          %334 = dma.hbm_to_vmem [thread:$0]  %s9, 1024, %s329, [#allocation3], 64, 64, 4
        $region48: #{tpu_custom_call.1} parent=11 // pred_fallthru
          _
        // Predicated region
        $region49: #{tpu_custom_call.1} parent=11 // pred_check
          %p335 = pneg %p257
        $region50: #{tpu_custom_call.1} parent=11 // pred_check_branch
          %337 = sbr.rel (%p335) target = $region52
        $region51: #{tpu_custom_call.1} parent=11 // pred_region
          _
        $region52: #{tpu_custom_call.1} parent=11 // pred_fallthru
          _
      $region12: #{tpu_custom_call.1} parent=5 // pred_fallthru
        _
      %p338 = scmp.lt.s32.totalorder %s21, 2
      // Predicated region
      $region53: #{tpu_custom_call.1} parent=5 // pred_check
        %p339 = pneg %p338
      $region54: #{tpu_custom_call.1} parent=5 // pred_check_branch
        %341 = sbr.rel (%p339) target = $region56
      $region55: #{tpu_custom_call.1} parent=5 // pred_region
        // Predicated region
        $region57: #{tpu_custom_call.1} parent=55 // pred_check
          %p342 = pneg %p41
        $region58: #{tpu_custom_call.1} parent=55 // pred_check_branch
          %344 = sbr.rel (%p342) target = $region60
        $region59: #{tpu_custom_call.1} parent=55 // pred_region
          %s345 = smul.u32 13, %s21
          %p346 = scmp.lt.s32.totalorder %s345, 25
          %s347 = scalar_select %p346, %s345, 25
          %s348 = smul.addr %s347, 8
          %s349 = scalar_lea.vmem %s0, %s348
          %s350 = smul.u32 13, %s21
        $region60: #{tpu_custom_call.1} parent=55 // pred_fallthru
          _
      $region56: #{tpu_custom_call.1} parent=5 // pred_fallthru
        _
      %p351 = scmp.le.s32.totalorder 1, %s21
      %p352 = scmp.lt.s32.totalorder %s21, 3
      %p353 = pnand %p351, %p352
      %p354 = pneg %p353
      // Predicated region
      $region61: #{tpu_custom_call.1} parent=5 // pred_check
        _
      $region62: #{tpu_custom_call.1} parent=5 // pred_check_branch
        %356 = sbr.rel (%p353) target = $region64
      $region63: #{tpu_custom_call.1} parent=5 // pred_region
        %s357 = ssub.s32 %s21, 1
        // Predicated region
        $region65: #{tpu_custom_call.1} parent=63 // pred_check
          %p358 = pneg %p236
        $region66: #{tpu_custom_call.1} parent=63 // pred_check_branch
          %360 = sbr.rel (%p358) target = $region68
        $region67: #{tpu_custom_call.1} parent=63 // pred_region
          %361 = dma.done [#allocation3], 1024
        $region68: #{tpu_custom_call.1} parent=63 // pred_fallthru
          _
        %s362 = smul.u32 13, %s26
        %p363 = scmp.lt.s32.totalorder %s362, 25
        %s364 = scalar_select %p363, %s362, 25
        %s365 = smul.addr %s364, 8
        %s366 = scalar_lea.vmem %s0, %s365
        %p367 = pneg %p47
        %p368 = pneg %p44
        %p369 = pneg %p68
        %p370 = pneg %p65
        %p371 = pneg %p89
        %p372 = pneg %p86
        %p373 = pneg %p110
        %p374 = pneg %p107
        %p375 = pneg %p131
        %p376 = pneg %p128
        %p377 = pneg %p152
        %p378 = pneg %p149
        %p379 = pneg %p173
        %p380 = pneg %p170
        %p381 = pneg %p194
        %p382 = pneg %p191
        %p383 = pneg %p215
        %p384 = pneg %p212
        %p385 = pneg %p236
        %p386 = pneg %p233
        %p387 = pneg %p257
        %p388 = pneg %p254
        %p389 = pneg %p283
        %p390 = pneg %p280
        %s391 = sand.u32 %s270, 1
        %s392 = scalar_lea.sflag [#allocation4], %s391
        %s393 = sand.u32 %s270, 1
        %s394 = smul.addr %s393, 104
        %s395 = scalar_lea.vmem [#allocation5], %s394
        %s396 = smul.u32 13, %s26
        %p397 = scmp.lt.s32.totalorder %s396, 25
        %s398 = scalar_select %p397, %s396, 25
        %s399 = smul.addr %s398, 8
        %s400 = scalar_lea.vmem %s0, %s399
        %s401 = smul.u32 13, %s26
        %s402 = smul.u32 13, %s26
        %v404 = vld [vmem:[%s400] sm:$0xff]
        %v405 = vld [vmem:[%s400 + $0x8] sm:$0xff]
        %v406 = vld [vmem:[%s400 + $0x10] sm:$0xff]
        %v407 = vld [vmem:[%s400 + $0x18] sm:$0xff]
        %v408 = vld [vmem:[%s400 + $0x20] sm:$0xff]
        %v409 = vld [vmem:[%s400 + $0x28] sm:$0xff]
        %v410 = vld [vmem:[%s400 + $0x30] sm:$0xff]
        %v411 = vld [vmem:[%s400 + $0x38] sm:$0xff]
        %v412 = vld [vmem:[%s400 + $0x40] sm:$0xff]
        %v413 = vld [vmem:[%s400 + $0x48] sm:$0xff]
        %v414 = vld [vmem:[%s400 + $0x50] sm:$0xff]
        %v415 = vld [vmem:[%s400 + $0x58] sm:$0xff]
        %v416 = vld [vmem:[%s400 + $0x60] sm:$0xff]
        %v417 = vld [vmem:[%s1] sm:$0xff]
        %v418 = vld [vmem:[%s2] sm:$0x1]
        %v420 = vlaneseq
        %v421 = vshrl.u32 %v420, 7
        %v422 = vsub.s32 0, %v421
        %v423 = vrot.slane %v418, %v422
        %vm425 = vcmask 64512
        %v427 = vsel %vm425, %v404, 0
        %v430 = vsel %vm425, %v405, 0
        %v433 = vsel %vm425, %v406, 0
        %v436 = vsel %vm425, %v407, 0
        %v439 = vsel %vm425, %v408, 0
        %v442 = vsel %vm425, %v409, 0
        %v445 = vsel %vm425, %v410, 0
        %v448 = vsel %vm425, %v411, 0
        %v451 = vsel %vm425, %v412, 0
        %v454 = vsel %vm425, %v413, 0
        %v457 = vsel %vm425, %v414, 0
        %v460 = vsel %vm425, %v415, 0
        %v463 = vsel %vm425, %v416, 0
        %465 = vmatprep.subr.mxu0 0.0
        %466 = vmatpush1.msra.mxu0 0.0
        %467 = vmatprep.subr.mxu0 0.0
        %468 = vmatpush1.msra.mxu0 0.0
        %469 = vmatprep.subr.mxu0 0.0
        %470 = vmatpush1.msra.mxu0 0.0
        %471 = vmatprep.subr.mxu0 0.0
        %472 = vmatpush1.msra.mxu0 0.0
        %473 = vmatprep.subr.mxu0 0.0
        %474 = vmatpush1.msra.mxu0 0.0
        %475 = vmatprep.subr.mxu0 0.0
        %476 = vmatpush1.msra.mxu0 0.0
        %477 = vmatprep.subr.mxu0 0.0
        %478 = vmatpush1.msra.mxu0 0.0
        %479 = vmatprep.subr.mxu0 0.0
        %480 = vmatpush1.msra.mxu0 0.0
        %481 = vmatprep.subr.mxu0 0.0
        %482 = vmatpush1.msra.mxu0 0.0
        %483 = vmatprep.subr.mxu0 0.0
        %484 = vmatpush1.msra.mxu0 0.0
        %485 = vmatprep.subr.mxu0 0.0
        %486 = vmatpush1.msra.mxu0 0.0
        %487 = vmatprep.subr.mxu0 0.0
        %488 = vmatpush1.msra.mxu0 0.0
        %489 = vmatprep.subr.mxu0 0.0
        %490 = vmatpush1.msra.mxu0 0.0
        %491 = vmatprep.subr.mxu0 0.0
        %492 = vmatpush1.msra.mxu0 0.0
        %493 = vmatprep.subr.mxu0 0.0
        %494 = vmatpush1.msra.mxu0 0.0
        %495 = vmatprep.subr.mxu0 0.0
        %496 = vmatpush1.msra.mxu0 %v417
        %497 = vmatprep.subr.mxu0 0.0
        %498 = vmatpush2.msra.mxu0 0.0
        %499 = vmatprep.subr.mxu0 0.0
        %500 = vmatpush2.msra.mxu0 0.0
        %501 = vmatprep.subr.mxu0 0.0
        %502 = vmatpush2.msra.mxu0 0.0
        %503 = vmatprep.subr.mxu0 0.0
        %504 = vmatpush2.msra.mxu0 0.0
        %505 = vmatprep.subr.mxu0 0.0
        %506 = vmatpush2.msra.mxu0 0.0
        %507 = vmatprep.subr.mxu0 0.0
        %508 = vmatpush2.msra.mxu0 0.0
        %509 = vmatprep.subr.mxu0 0.0
        %510 = vmatpush2.msra.mxu0 0.0
        %511 = vmatprep.subr.mxu0 0.0
        %512 = vmatpush2.msra.mxu0 0.0
        %513 = vmatprep.subr.mxu0 0.0
        %514 = vmatpush2.msra.mxu0 0.0
        %515 = vmatprep.subr.mxu0 0.0
        %516 = vmatpush2.msra.mxu0 0.0
        %517 = vmatprep.subr.mxu0 0.0
        %518 = vmatpush2.msra.mxu0 0.0
        %519 = vmatprep.subr.mxu0 0.0
        %520 = vmatpush2.msra.mxu0 0.0
        %521 = vmatprep.subr.mxu0 0.0
        %522 = vmatpush2.msra.mxu0 0.0
        %523 = vmatprep.subr.mxu0 0.0
        %524 = vmatpush2.msra.mxu0 0.0
        %525 = vmatprep.subr.mxu0 0.0
        %526 = vmatpush2.msra.mxu0 0.0
        %527 = vmatprep.subr.mxu0 0.0
        %528 = vmatpush2.msra.mxu0 0.0
        %529 = vmatprep.mubr.f32.mxu0 0.0
        %530 = vmatmul.mubr.f32.gmra.mxu0 %v427
        %v531 = vpop.f32.mrf.mxu0
        %v532 = vadd.f32 %v423, %v531
        %v533 = vpop.f32.mrf.mxu0
        %534 = vmatprep.mubr.f32.mxu0 0.0
        %535 = vmatmul.mubr.f32.gmra.mxu0 %v430
        %v536 = vpop.f32.mrf.mxu0
        %v537 = vadd.f32 %v423, %v536
        %v538 = vpop.f32.mrf.mxu0
        %539 = vmatprep.mubr.f32.mxu0 0.0
        %540 = vmatmul.mubr.f32.gmra.mxu0 %v433
        %v541 = vpop.f32.mrf.mxu0
        %v542 = vadd.f32 %v423, %v541
        %v543 = vpop.f32.mrf.mxu0
        %544 = vmatprep.mubr.f32.mxu0 0.0
        %545 = vmatmul.mubr.f32.gmra.mxu0 %v436
        %v546 = vpop.f32.mrf.mxu0
        %v547 = vadd.f32 %v423, %v546
        %v548 = vpop.f32.mrf.mxu0
        %549 = vmatprep.mubr.f32.mxu0 0.0
        %550 = vmatmul.mubr.f32.gmra.mxu0 %v439
        %v551 = vpop.f32.mrf.mxu0
        %v552 = vadd.f32 %v423, %v551
        %v553 = vpop.f32.mrf.mxu0
        %554 = vmatprep.mubr.f32.mxu0 0.0
        %555 = vmatmul.mubr.f32.gmra.mxu0 %v442
        %v556 = vpop.f32.mrf.mxu0
        %v557 = vadd.f32 %v423, %v556
        %v558 = vpop.f32.mrf.mxu0
        %559 = vmatprep.mubr.f32.mxu0 0.0
        %560 = vmatmul.mubr.f32.gmra.mxu0 %v445
        %v561 = vpop.f32.mrf.mxu0
        %v562 = vadd.f32 %v423, %v561
        %v563 = vpop.f32.mrf.mxu0
        %564 = vmatprep.mubr.f32.mxu0 0.0
        %565 = vmatmul.mubr.f32.gmra.mxu0 %v448
        %v566 = vpop.f32.mrf.mxu0
        %v567 = vadd.f32 %v423, %v566
        %v568 = vpop.f32.mrf.mxu0
        %569 = vmatprep.mubr.f32.mxu0 0.0
        %570 = vmatmul.mubr.f32.gmra.mxu0 %v451
        %v571 = vpop.f32.mrf.mxu0
        %v572 = vadd.f32 %v423, %v571
        %v573 = vpop.f32.mrf.mxu0
        %574 = vmatprep.mubr.f32.mxu0 0.0
        %575 = vmatmul.mubr.f32.gmra.mxu0 %v454
        %v576 = vpop.f32.mrf.mxu0
        %v577 = vadd.f32 %v423, %v576
        %v578 = vpop.f32.mrf.mxu0
        %579 = vmatprep.mubr.f32.mxu0 0.0
        %580 = vmatmul.mubr.f32.gmra.mxu0 %v457
        %v581 = vpop.f32.mrf.mxu0
        %v582 = vadd.f32 %v423, %v581
        %v583 = vpop.f32.mrf.mxu0
        %584 = vmatprep.mubr.f32.mxu0 0.0
        %585 = vmatmul.mubr.f32.gmra.mxu0 %v460
        %v586 = vpop.f32.mrf.mxu0
        %v587 = vadd.f32 %v423, %v586
        %v588 = vpop.f32.mrf.mxu0
        %589 = vmatprep.mubr.f32.mxu0 0.0
        %590 = vmatmul.mubr.f32.gmra.mxu0 %v463
        %v591 = vpop.f32.mrf.mxu0
        %v592 = vadd.f32 %v423, %v591
        %v593 = vpop.f32.mrf.mxu0
        %594 = vdwg.mxu0
        %v595 = vmul.f32 %v532, 0.5
        %v596 = vmul.f32 %v537, 0.5
        %v597 = vmul.f32 %v542, 0.5
        %v598 = vmul.f32 %v547, 0.5
        %v599 = vmul.f32 %v552, 0.5
        %v600 = vmul.f32 %v557, 0.5
        %v601 = vmul.f32 %v562, 0.5
        %v602 = vmul.f32 %v567, 0.5
        %v603 = vmul.f32 %v572, 0.5
        %v604 = vmul.f32 %v577, 0.5
        %v605 = vmul.f32 %v582, 0.5
        %v606 = vmul.f32 %v587, 0.5
        %v607 = vmul.f32 %v592, 0.5
        %v608 = vmul.f32 %v532, %v532
        %v609 = vmul.f32 %v537, %v537
        %v610 = vmul.f32 %v542, %v542
        %v611 = vmul.f32 %v547, %v547
        %v612 = vmul.f32 %v552, %v552
        %v613 = vmul.f32 %v557, %v557
        %v614 = vmul.f32 %v562, %v562
        %v615 = vmul.f32 %v567, %v567
        %v616 = vmul.f32 %v572, %v572
        %v617 = vmul.f32 %v577, %v577
        %v618 = vmul.f32 %v582, %v582
        %v619 = vmul.f32 %v587, %v587
        %v620 = vmul.f32 %v592, %v592
        %v621 = vmul.f32 %v608, 0.035677407
        %v622 = vmul.f32 %v609, 0.035677407
        %v623 = vmul.f32 %v610, 0.035677407
        %v624 = vmul.f32 %v611, 0.035677407
        %v625 = vmul.f32 %v612, 0.035677407
        %v626 = vmul.f32 %v613, 0.035677407
        %v627 = vmul.f32 %v614, 0.035677407
        %v628 = vmul.f32 %v615, 0.035677407
        %v629 = vmul.f32 %v616, 0.035677407
        %v630 = vmul.f32 %v617, 0.035677407
        %v631 = vmul.f32 %v618, 0.035677407
        %v632 = vmul.f32 %v619, 0.035677407
        %v633 = vmul.f32 %v620, 0.035677407
        %v634 = vadd.f32 %v621, 0.7978846
        %v635 = vadd.f32 %v622, 0.7978846
        %v636 = vadd.f32 %v623, 0.7978846
        %v637 = vadd.f32 %v624, 0.7978846
        %v638 = vadd.f32 %v625, 0.7978846
        %v639 = vadd.f32 %v626, 0.7978846
        %v640 = vadd.f32 %v627, 0.7978846
        %v641 = vadd.f32 %v628, 0.7978846
        %v642 = vadd.f32 %v629, 0.7978846
        %v643 = vadd.f32 %v630, 0.7978846
        %v644 = vadd.f32 %v631, 0.7978846
        %v645 = vadd.f32 %v632, 0.7978846
        %v646 = vadd.f32 %v633, 0.7978846
        %v647 = vmul.f32 %v532, %v634
        %v648 = vmul.f32 %v537, %v635
        %v649 = vmul.f32 %v542, %v636
        %v650 = vmul.f32 %v547, %v637
        %v651 = vmul.f32 %v552, %v638
        %v652 = vmul.f32 %v557, %v639
        %v653 = vmul.f32 %v562, %v640
        %v654 = vmul.f32 %v567, %v641
        %v655 = vmul.f32 %v572, %v642
        %v656 = vmul.f32 %v577, %v643
        %v657 = vmul.f32 %v582, %v644
        %v658 = vmul.f32 %v587, %v645
        %v659 = vmul.f32 %v592, %v646
        %v660 = vtanh.pop %v647
        %v661 = vtanh.pop %v648
        %v662 = vtanh.pop %v649
        %v663 = vtanh.pop %v650
        %v664 = vtanh.pop %v651
        %v665 = vtanh.pop %v652
        %v666 = vtanh.pop %v653
        %v667 = vtanh.pop %v654
        %v668 = vtanh.pop %v655
        %v669 = vtanh.pop %v656
        %v670 = vtanh.pop %v657
        %v671 = vtanh.pop %v658
        %v672 = vtanh.pop %v659
        %v673 = vmul.f32 %v595, %v660
        %v674 = vmul.f32 %v596, %v661
        %v675 = vmul.f32 %v597, %v662
        %v676 = vmul.f32 %v598, %v663
        %v677 = vmul.f32 %v599, %v664
        %v678 = vmul.f32 %v600, %v665
        %v679 = vmul.f32 %v601, %v666
        %v680 = vmul.f32 %v602, %v667
        %v681 = vmul.f32 %v603, %v668
        %v682 = vmul.f32 %v604, %v669
        %v683 = vmul.f32 %v605, %v670
        %v684 = vmul.f32 %v606, %v671
        %v685 = vmul.f32 %v607, %v672
        %v686 = vadd.f32 %v595, %v673
        %v687 = vadd.f32 %v596, %v674
        %v688 = vadd.f32 %v597, %v675
        %v689 = vadd.f32 %v598, %v676
        %v690 = vadd.f32 %v599, %v677
        %v691 = vadd.f32 %v600, %v678
        %v692 = vadd.f32 %v601, %v679
        %v693 = vadd.f32 %v602, %v680
        %v694 = vadd.f32 %v603, %v681
        %v695 = vadd.f32 %v604, %v682
        %v696 = vadd.f32 %v605, %v683
        %v697 = vadd.f32 %v606, %v684
        %v698 = vadd.f32 %v607, %v685
        %v699 = vpack.c.bf16 %v687, %v686
        %v700 = vpack.c.bf16 %v689, %v688
        %v701 = vpack.c.bf16 %v691, %v690
        %v702 = vpack.c.bf16 %v693, %v692
        %v703 = vpack.c.bf16 %v695, %v694
        %v704 = vpack.c.bf16 %v697, %v696
        %v705 = vpack.c.bf16 %v698, %v698
        %v706 = vld [vmem:[%s3] sm:$0xf]
        %v707 = vld [vmem:[%s3 + $0x4] sm:$0xf]
        %v708 = vld [vmem:[%s3 + $0x8] sm:$0xf]
        %v709 = vld [vmem:[%s3 + $0xc] sm:$0xf]
        %v710 = vld [vmem:[%s3 + $0x10] sm:$0xf]
        %v711 = vld [vmem:[%s3 + $0x14] sm:$0xf]
        %v712 = vld [vmem:[%s3 + $0x18] sm:$0xf]
        %v713 = vld [vmem:[%s3 + $0x1c] sm:$0xf]
        %v714 = vld [vmem:[%s3 + $0x20] sm:$0xf]
        %v715 = vld [vmem:[%s3 + $0x24] sm:$0xf]
        %v716 = vld [vmem:[%s3 + $0x28] sm:$0xf]
        %v717 = vld [vmem:[%s3 + $0x2c] sm:$0xf]
        %v718 = vld [vmem:[%s3 + $0x30] sm:$0xf]
        %v719 = vld [vmem:[%s3 + $0x34] sm:$0xf]
        %v720 = vld [vmem:[%s3 + $0x38] sm:$0xf]
        %v721 = vld [vmem:[%s3 + $0x3c] sm:$0xf]
        %v722 = vld [vmem:[%s4] sm:$0x1]
        %v724 = vlaneseq
        %v725 = vshrl.u32 %v724, 7
        %v726 = vsub.s32 0, %v725
        %v727 = vrot.slane %v722, %v726
        %v745 = vunpack.c.l.b16 %v706
        %v746 = vunpack.c.l.b16 %v707
        %v747 = vunpack.c.l.b16 %v708
        %v748 = vunpack.c.l.b16 %v709
        %v749 = vunpack.c.l.b16 %v710
        %v750 = vunpack.c.l.b16 %v711
        %v751 = vunpack.c.l.b16 %v712
        %v752 = vunpack.c.l.b16 %v713
        %v753 = vunpack.c.l.b16 %v714
        %v754 = vunpack.c.l.b16 %v715
        %v755 = vunpack.c.l.b16 %v716
        %v756 = vunpack.c.l.b16 %v717
        %v757 = vunpack.c.l.b16 %v718
        %v758 = vunpack.c.l.b16 %v719
        %v759 = vunpack.c.l.b16 %v720
        %v760 = vunpack.c.l.b16 %v721
        %v761 = vpack.c.b16 %v746, %v745
        %v762 = vpack.c.b16 %v748, %v747
        %v763 = vpack.c.b16 %v750, %v749
        %v764 = vpack.c.b16 %v752, %v751
        %v765 = vpack.c.b16 %v754, %v753
        %v766 = vpack.c.b16 %v756, %v755
        %v767 = vpack.c.b16 %v758, %v757
        %v768 = vpack.c.b16 %v760, %v759
        %777 = vmatprep.subr.bf16.mxu0 0
        %778 = vmatpush1.bf16.msra.mxu0 %v768
        %779 = vmatprep.subr.bf16.mxu0 0
        %780 = vmatpush1.bf16.msra.mxu0 %v767
        %781 = vmatprep.subr.bf16.mxu0 0
        %782 = vmatpush1.bf16.msra.mxu0 %v766
        %783 = vmatprep.subr.bf16.mxu0 0
        %784 = vmatpush1.bf16.msra.mxu0 %v765
        %785 = vmatprep.subr.bf16.mxu0 0
        %786 = vmatpush1.bf16.msra.mxu0 %v764
        %787 = vmatprep.subr.bf16.mxu0 0
        %788 = vmatpush1.bf16.msra.mxu0 %v763
        %789 = vmatprep.subr.bf16.mxu0 0
        %790 = vmatpush1.bf16.msra.mxu0 %v762
        %791 = vmatprep.subr.bf16.mxu0 0
        %792 = vmatpush1.bf16.msra.mxu0 %v761
        %793 = vmatprep.subr.bf16.mxu0 0
        %794 = vmatpush2.bf16.msra.mxu0 0
        %795 = vmatprep.subr.bf16.mxu0 0
        %796 = vmatpush2.bf16.msra.mxu0 0
        %797 = vmatprep.subr.bf16.mxu0 0
        %798 = vmatpush2.bf16.msra.mxu0 0
        %799 = vmatprep.subr.bf16.mxu0 0
        %800 = vmatpush2.bf16.msra.mxu0 0
        %801 = vmatprep.subr.bf16.mxu0 0
        %802 = vmatpush2.bf16.msra.mxu0 0
        %803 = vmatprep.subr.bf16.mxu0 0
        %804 = vmatpush2.bf16.msra.mxu0 0
        %805 = vmatprep.subr.bf16.mxu0 0
        %806 = vmatpush2.bf16.msra.mxu0 0
        %807 = vmatprep.subr.bf16.mxu0 0
        %808 = vmatpush2.bf16.msra.mxu0 0
        %809 = vmatprep.mubr.bf16.mxu0 0
        %810 = vmatmul.mubr.bf16.gmra.mxu0 %v699
        %v811 = vpop.f32.mrf.mxu0
        %v812 = vadd.f32 %v727, %v811
        %v813 = vpop.f32.mrf.mxu0
        %v814 = vpop.f32.mrf.mxu0
        %v815 = vadd.f32 %v727, %v814
        %v816 = vpop.f32.mrf.mxu0
        %817 = vmatprep.mubr.bf16.mxu0 0
        %818 = vmatmul.mubr.bf16.gmra.mxu0 %v700
        %v819 = vpop.f32.mrf.mxu0
        %v820 = vadd.f32 %v727, %v819
        %v821 = vpop.f32.mrf.mxu0
        %v822 = vpop.f32.mrf.mxu0
        %v823 = vadd.f32 %v727, %v822
        %v824 = vpop.f32.mrf.mxu0
        %825 = vmatprep.mubr.bf16.mxu0 0
        %826 = vmatmul.mubr.bf16.gmra.mxu0 %v701
        %v827 = vpop.f32.mrf.mxu0
        %v828 = vadd.f32 %v727, %v827
        %v829 = vpop.f32.mrf.mxu0
        %v830 = vpop.f32.mrf.mxu0
        %v831 = vadd.f32 %v727, %v830
        %v832 = vpop.f32.mrf.mxu0
        %833 = vmatprep.mubr.bf16.mxu0 0
        %834 = vmatmul.mubr.bf16.gmra.mxu0 %v702
        %v835 = vpop.f32.mrf.mxu0
        %v836 = vadd.f32 %v727, %v835
        %v837 = vpop.f32.mrf.mxu0
        %v838 = vpop.f32.mrf.mxu0
        %v839 = vadd.f32 %v727, %v838
        %v840 = vpop.f32.mrf.mxu0
        %841 = vmatprep.mubr.bf16.mxu0 0
        %842 = vmatmul.mubr.bf16.gmra.mxu0 %v703
        %v843 = vpop.f32.mrf.mxu0
        %v844 = vadd.f32 %v727, %v843
        %v845 = vpop.f32.mrf.mxu0
        %v846 = vpop.f32.mrf.mxu0
        %v847 = vadd.f32 %v727, %v846
        %v848 = vpop.f32.mrf.mxu0
        %849 = vmatprep.mubr.bf16.mxu0 0
        %850 = vmatmul.mubr.bf16.gmra.mxu0 %v704
        %v851 = vpop.f32.mrf.mxu0
        %v852 = vadd.f32 %v727, %v851
        %v853 = vpop.f32.mrf.mxu0
        %v854 = vpop.f32.mrf.mxu0
        %v855 = vadd.f32 %v727, %v854
        %v856 = vpop.f32.mrf.mxu0
        %857 = vmatprep.mubr.bf16.mxu0 0
        %858 = vmatmul.mubr.bf16.gmra.mxu0 %v705
        %v859 = vpop.f32.mrf.mxu0
        %v860 = vadd.f32 %v727, %v859
        %v861 = vpop.f32.mrf.mxu0
        %v862 = vpop.f32.mrf.mxu0
        %v863 = vpop.f32.mrf.mxu0
        %864 = vdwg.mxu0
        %v865 = vmul.f32 %v812, 0.5
        %v866 = vmul.f32 %v815, 0.5
        %v867 = vmul.f32 %v820, 0.5
        %v868 = vmul.f32 %v823, 0.5
        %v869 = vmul.f32 %v828, 0.5
        %v870 = vmul.f32 %v831, 0.5
        %v871 = vmul.f32 %v836, 0.5
        %v872 = vmul.f32 %v839, 0.5
        %v873 = vmul.f32 %v844, 0.5
        %v874 = vmul.f32 %v847, 0.5
        %v875 = vmul.f32 %v852, 0.5
        %v876 = vmul.f32 %v855, 0.5
        %v877 = vmul.f32 %v860, 0.5
        %v878 = vmul.f32 %v812, %v812
        %v879 = vmul.f32 %v815, %v815
        %v880 = vmul.f32 %v820, %v820
        %v881 = vmul.f32 %v823, %v823
        %v882 = vmul.f32 %v828, %v828
        %v883 = vmul.f32 %v831, %v831
        %v884 = vmul.f32 %v836, %v836
        %v885 = vmul.f32 %v839, %v839
        %v886 = vmul.f32 %v844, %v844
        %v887 = vmul.f32 %v847, %v847
        %v888 = vmul.f32 %v852, %v852
        %v889 = vmul.f32 %v855, %v855
        %v890 = vmul.f32 %v860, %v860
        %v891 = vmul.f32 %v878, 0.035677407
        %v892 = vmul.f32 %v879, 0.035677407
        %v893 = vmul.f32 %v880, 0.035677407
        %v894 = vmul.f32 %v881, 0.035677407
        %v895 = vmul.f32 %v882, 0.035677407
        %v896 = vmul.f32 %v883, 0.035677407
        %v897 = vmul.f32 %v884, 0.035677407
        %v898 = vmul.f32 %v885, 0.035677407
        %v899 = vmul.f32 %v886, 0.035677407
        %v900 = vmul.f32 %v887, 0.035677407
        %v901 = vmul.f32 %v888, 0.035677407
        %v902 = vmul.f32 %v889, 0.035677407
        %v903 = vmul.f32 %v890, 0.035677407
        %v904 = vadd.f32 %v891, 0.7978846
        %v905 = vadd.f32 %v892, 0.7978846
        %v906 = vadd.f32 %v893, 0.7978846
        %v907 = vadd.f32 %v894, 0.7978846
        %v908 = vadd.f32 %v895, 0.7978846
        %v909 = vadd.f32 %v896, 0.7978846
        %v910 = vadd.f32 %v897, 0.7978846
        %v911 = vadd.f32 %v898, 0.7978846
        %v912 = vadd.f32 %v899, 0.7978846
        %v913 = vadd.f32 %v900, 0.7978846
        %v914 = vadd.f32 %v901, 0.7978846
        %v915 = vadd.f32 %v902, 0.7978846
        %v916 = vadd.f32 %v903, 0.7978846
        %v917 = vmul.f32 %v812, %v904
        %v918 = vmul.f32 %v815, %v905
        %v919 = vmul.f32 %v820, %v906
        %v920 = vmul.f32 %v823, %v907
        %v921 = vmul.f32 %v828, %v908
        %v922 = vmul.f32 %v831, %v909
        %v923 = vmul.f32 %v836, %v910
        %v924 = vmul.f32 %v839, %v911
        %v925 = vmul.f32 %v844, %v912
        %v926 = vmul.f32 %v847, %v913
        %v927 = vmul.f32 %v852, %v914
        %v928 = vmul.f32 %v855, %v915
        %v929 = vmul.f32 %v860, %v916
        %v930 = vtanh.pop %v917
        %v931 = vtanh.pop %v918
        %v932 = vtanh.pop %v919
        %v933 = vtanh.pop %v920
        %v934 = vtanh.pop %v921
        %v935 = vtanh.pop %v922
        %v936 = vtanh.pop %v923
        %v937 = vtanh.pop %v924
        %v938 = vtanh.pop %v925
        %v939 = vtanh.pop %v926
        %v940 = vtanh.pop %v927
        %v941 = vtanh.pop %v928
        %v942 = vtanh.pop %v929
        %v943 = vmul.f32 %v865, %v930
        %v944 = vmul.f32 %v866, %v931
        %v945 = vmul.f32 %v867, %v932
        %v946 = vmul.f32 %v868, %v933
        %v947 = vmul.f32 %v869, %v934
        %v948 = vmul.f32 %v870, %v935
        %v949 = vmul.f32 %v871, %v936
        %v950 = vmul.f32 %v872, %v937
        %v951 = vmul.f32 %v873, %v938
        %v952 = vmul.f32 %v874, %v939
        %v953 = vmul.f32 %v875, %v940
        %v954 = vmul.f32 %v876, %v941
        %v955 = vmul.f32 %v877, %v942
        %v956 = vadd.f32 %v865, %v943
        %v957 = vadd.f32 %v866, %v944
        %v958 = vadd.f32 %v867, %v945
        %v959 = vadd.f32 %v868, %v946
        %v960 = vadd.f32 %v869, %v947
        %v961 = vadd.f32 %v870, %v948
        %v962 = vadd.f32 %v871, %v949
        %v963 = vadd.f32 %v872, %v950
        %v964 = vadd.f32 %v873, %v951
        %v965 = vadd.f32 %v874, %v952
        %v966 = vadd.f32 %v875, %v953
        %v967 = vadd.f32 %v876, %v954
        %v968 = vadd.f32 %v877, %v955
        %v969 = vadd.f32 %v686, %v956
        %v970 = vadd.f32 %v687, %v957
        %v971 = vadd.f32 %v688, %v958
        %v972 = vadd.f32 %v689, %v959
        %v973 = vadd.f32 %v690, %v960
        %v974 = vadd.f32 %v691, %v961
        %v975 = vadd.f32 %v692, %v962
        %v976 = vadd.f32 %v693, %v963
        %v977 = vadd.f32 %v694, %v964
        %v978 = vadd.f32 %v695, %v965
        %v979 = vadd.f32 %v696, %v966
        %v980 = vadd.f32 %v697, %v967
        %v981 = vadd.f32 %v698, %v968
        %v982 = vpack.c.bf16 %v970, %v969
        %v983 = vpack.c.bf16 %v972, %v971
        %v984 = vpack.c.bf16 %v974, %v973
        %v985 = vpack.c.bf16 %v976, %v975
        %v986 = vpack.c.bf16 %v978, %v977
        %v987 = vpack.c.bf16 %v980, %v979
        %v988 = vpack.c.bf16 %v981, %v981
        %v989 = vld [vmem:[%s5] sm:$0xf]
        %v990 = vld [vmem:[%s5 + $0x4] sm:$0xf]
        %v991 = vld [vmem:[%s5 + $0x8] sm:$0xf]
        %v992 = vld [vmem:[%s5 + $0xc] sm:$0xf]
        %v993 = vld [vmem:[%s5 + $0x10] sm:$0xf]
        %v994 = vld [vmem:[%s5 + $0x14] sm:$0xf]
        %v995 = vld [vmem:[%s5 + $0x18] sm:$0xf]
        %v996 = vld [vmem:[%s5 + $0x1c] sm:$0xf]
        %v997 = vld [vmem:[%s5 + $0x20] sm:$0xf]
        %v998 = vld [vmem:[%s5 + $0x24] sm:$0xf]
        %v999 = vld [vmem:[%s5 + $0x28] sm:$0xf]
        %v1000 = vld [vmem:[%s5 + $0x2c] sm:$0xf]
        %v1001 = vld [vmem:[%s5 + $0x30] sm:$0xf]
        %v1002 = vld [vmem:[%s5 + $0x34] sm:$0xf]
        %v1003 = vld [vmem:[%s5 + $0x38] sm:$0xf]
        %v1004 = vld [vmem:[%s5 + $0x3c] sm:$0xf]
        %v1005 = vld [vmem:[%s6] sm:$0x1]
        %v1007 = vlaneseq
        %v1008 = vshrl.u32 %v1007, 7
        %v1009 = vsub.s32 0, %v1008
        %v1010 = vrot.slane %v1005, %v1009
        %v1028 = vunpack.c.l.b16 %v989
        %v1029 = vunpack.c.l.b16 %v990
        %v1030 = vunpack.c.l.b16 %v991
        %v1031 = vunpack.c.l.b16 %v992
        %v1032 = vunpack.c.l.b16 %v993
        %v1033 = vunpack.c.l.b16 %v994
        %v1034 = vunpack.c.l.b16 %v995
        %v1035 = vunpack.c.l.b16 %v996
        %v1036 = vunpack.c.l.b16 %v997
        %v1037 = vunpack.c.l.b16 %v998
        %v1038 = vunpack.c.l.b16 %v999
        %v1039 = vunpack.c.l.b16 %v1000
        %v1040 = vunpack.c.l.b16 %v1001
        %v1041 = vunpack.c.l.b16 %v1002
        %v1042 = vunpack.c.l.b16 %v1003
        %v1043 = vunpack.c.l.b16 %v1004
        %v1044 = vpack.c.b16 %v1029, %v1028
        %v1045 = vpack.c.b16 %v1031, %v1030
        %v1046 = vpack.c.b16 %v1033, %v1032
        %v1047 = vpack.c.b16 %v1035, %v1034
        %v1048 = vpack.c.b16 %v1037, %v1036
        %v1049 = vpack.c.b16 %v1039, %v1038
        %v1050 = vpack.c.b16 %v1041, %v1040
        %v1051 = vpack.c.b16 %v1043, %v1042
        %1060 = vmatprep.subr.bf16.mxu0 0
        %1061 = vmatpush1.bf16.msra.mxu0 %v1051
        %1062 = vmatprep.subr.bf16.mxu0 0
        %1063 = vmatpush1.bf16.msra.mxu0 %v1050
        %1064 = vmatprep.subr.bf16.mxu0 0
        %1065 = vmatpush1.bf16.msra.mxu0 %v1049
        %1066 = vmatprep.subr.bf16.mxu0 0
        %1067 = vmatpush1.bf16.msra.mxu0 %v1048
        %1068 = vmatprep.subr.bf16.mxu0 0
        %1069 = vmatpush1.bf16.msra.mxu0 %v1047
        %1070 = vmatprep.subr.bf16.mxu0 0
        %1071 = vmatpush1.bf16.msra.mxu0 %v1046
        %1072 = vmatprep.subr.bf16.mxu0 0
        %1073 = vmatpush1.bf16.msra.mxu0 %v1045
        %1074 = vmatprep.subr.bf16.mxu0 0
        %1075 = vmatpush1.bf16.msra.mxu0 %v1044
        %1076 = vmatprep.subr.bf16.mxu0 0
        %1077 = vmatpush2.bf16.msra.mxu0 0
        %1078 = vmatprep.subr.bf16.mxu0 0
        %1079 = vmatpush2.bf16.msra.mxu0 0
        %1080 = vmatprep.subr.bf16.mxu0 0
        %1081 = vmatpush2.bf16.msra.mxu0 0
        %1082 = vmatprep.subr.bf16.mxu0 0
        %1083 = vmatpush2.bf16.msra.mxu0 0
        %1084 = vmatprep.subr.bf16.mxu0 0
        %1085 = vmatpush2.bf16.msra.mxu0 0
        %1086 = vmatprep.subr.bf16.mxu0 0
        %1087 = vmatpush2.bf16.msra.mxu0 0
        %1088 = vmatprep.subr.bf16.mxu0 0
        %1089 = vmatpush2.bf16.msra.mxu0 0
        %1090 = vmatprep.subr.bf16.mxu0 0
        %1091 = vmatpush2.bf16.msra.mxu0 0
        %1092 = vmatprep.mubr.bf16.mxu0 0
        %1093 = vmatmul.mubr.bf16.gmra.mxu0 %v982
        %v1094 = vpop.f32.mrf.mxu0
        %v1095 = vadd.f32 %v1010, %v1094
        %v1096 = vpop.f32.mrf.mxu0
        %v1097 = vpop.f32.mrf.mxu0
        %v1098 = vadd.f32 %v1010, %v1097
        %v1099 = vpop.f32.mrf.mxu0
        %1100 = vmatprep.mubr.bf16.mxu0 0
        %1101 = vmatmul.mubr.bf16.gmra.mxu0 %v983
        %v1102 = vpop.f32.mrf.mxu0
        %v1103 = vadd.f32 %v1010, %v1102
        %v1104 = vpop.f32.mrf.mxu0
        %v1105 = vpop.f32.mrf.mxu0
        %v1106 = vadd.f32 %v1010, %v1105
        %v1107 = vpop.f32.mrf.mxu0
        %1108 = vmatprep.mubr.bf16.mxu0 0
        %1109 = vmatmul.mubr.bf16.gmra.mxu0 %v984
        %v1110 = vpop.f32.mrf.mxu0
        %v1111 = vadd.f32 %v1010, %v1110
        %v1112 = vpop.f32.mrf.mxu0
        %v1113 = vpop.f32.mrf.mxu0
        %v1114 = vadd.f32 %v1010, %v1113
        %v1115 = vpop.f32.mrf.mxu0
        %1116 = vmatprep.mubr.bf16.mxu0 0
        %1117 = vmatmul.mubr.bf16.gmra.mxu0 %v985
        %v1118 = vpop.f32.mrf.mxu0
        %v1119 = vadd.f32 %v1010, %v1118
        %v1120 = vpop.f32.mrf.mxu0
        %v1121 = vpop.f32.mrf.mxu0
        %v1122 = vadd.f32 %v1010, %v1121
        %v1123 = vpop.f32.mrf.mxu0
        %1124 = vmatprep.mubr.bf16.mxu0 0
        %1125 = vmatmul.mubr.bf16.gmra.mxu0 %v986
        %v1126 = vpop.f32.mrf.mxu0
        %v1127 = vadd.f32 %v1010, %v1126
        %v1128 = vpop.f32.mrf.mxu0
        %v1129 = vpop.f32.mrf.mxu0
        %v1130 = vadd.f32 %v1010, %v1129
        %v1131 = vpop.f32.mrf.mxu0
        %1132 = vmatprep.mubr.bf16.mxu0 0
        %1133 = vmatmul.mubr.bf16.gmra.mxu0 %v987
        %v1134 = vpop.f32.mrf.mxu0
        %v1135 = vadd.f32 %v1010, %v1134
        %v1136 = vpop.f32.mrf.mxu0
        %v1137 = vpop.f32.mrf.mxu0
        %v1138 = vadd.f32 %v1010, %v1137
        %v1139 = vpop.f32.mrf.mxu0
        %1140 = vmatprep.mubr.bf16.mxu0 0
        %1141 = vmatmul.mubr.bf16.gmra.mxu0 %v988
        %v1142 = vpop.f32.mrf.mxu0
        %v1143 = vadd.f32 %v1010, %v1142
        %v1144 = vpop.f32.mrf.mxu0
        %v1145 = vpop.f32.mrf.mxu0
        %v1146 = vpop.f32.mrf.mxu0
        %1147 = vdwg.mxu0
        %v1148 = vmul.f32 %v1095, 0.5
        %v1149 = vmul.f32 %v1098, 0.5
        %v1150 = vmul.f32 %v1103, 0.5
        %v1151 = vmul.f32 %v1106, 0.5
        %v1152 = vmul.f32 %v1111, 0.5
        %v1153 = vmul.f32 %v1114, 0.5
        %v1154 = vmul.f32 %v1119, 0.5
        %v1155 = vmul.f32 %v1122, 0.5
        %v1156 = vmul.f32 %v1127, 0.5
        %v1157 = vmul.f32 %v1130, 0.5
        %v1158 = vmul.f32 %v1135, 0.5
        %v1159 = vmul.f32 %v1138, 0.5
        %v1160 = vmul.f32 %v1143, 0.5
        %v1161 = vmul.f32 %v1095, %v1095
        %v1162 = vmul.f32 %v1098, %v1098
        %v1163 = vmul.f32 %v1103, %v1103
        %v1164 = vmul.f32 %v1106, %v1106
        %v1165 = vmul.f32 %v1111, %v1111
        %v1166 = vmul.f32 %v1114, %v1114
        %v1167 = vmul.f32 %v1119, %v1119
        %v1168 = vmul.f32 %v1122, %v1122
        %v1169 = vmul.f32 %v1127, %v1127
        %v1170 = vmul.f32 %v1130, %v1130
        %v1171 = vmul.f32 %v1135, %v1135
        %v1172 = vmul.f32 %v1138, %v1138
        %v1173 = vmul.f32 %v1143, %v1143
        %v1174 = vmul.f32 %v1161, 0.035677407
        %v1175 = vmul.f32 %v1162, 0.035677407
        %v1176 = vmul.f32 %v1163, 0.035677407
        %v1177 = vmul.f32 %v1164, 0.035677407
        %v1178 = vmul.f32 %v1165, 0.035677407
        %v1179 = vmul.f32 %v1166, 0.035677407
        %v1180 = vmul.f32 %v1167, 0.035677407
        %v1181 = vmul.f32 %v1168, 0.035677407
        %v1182 = vmul.f32 %v1169, 0.035677407
        %v1183 = vmul.f32 %v1170, 0.035677407
        %v1184 = vmul.f32 %v1171, 0.035677407
        %v1185 = vmul.f32 %v1172, 0.035677407
        %v1186 = vmul.f32 %v1173, 0.035677407
        %v1187 = vadd.f32 %v1174, 0.7978846
        %v1188 = vadd.f32 %v1175, 0.7978846
        %v1189 = vadd.f32 %v1176, 0.7978846
        %v1190 = vadd.f32 %v1177, 0.7978846
        %v1191 = vadd.f32 %v1178, 0.7978846
        %v1192 = vadd.f32 %v1179, 0.7978846
        %v1193 = vadd.f32 %v1180, 0.7978846
        %v1194 = vadd.f32 %v1181, 0.7978846
        %v1195 = vadd.f32 %v1182, 0.7978846
        %v1196 = vadd.f32 %v1183, 0.7978846
        %v1197 = vadd.f32 %v1184, 0.7978846
        %v1198 = vadd.f32 %v1185, 0.7978846
        %v1199 = vadd.f32 %v1186, 0.7978846
        %v1200 = vmul.f32 %v1095, %v1187
        %v1201 = vmul.f32 %v1098, %v1188
        %v1202 = vmul.f32 %v1103, %v1189
        %v1203 = vmul.f32 %v1106, %v1190
        %v1204 = vmul.f32 %v1111, %v1191
        %v1205 = vmul.f32 %v1114, %v1192
        %v1206 = vmul.f32 %v1119, %v1193
        %v1207 = vmul.f32 %v1122, %v1194
        %v1208 = vmul.f32 %v1127, %v1195
        %v1209 = vmul.f32 %v1130, %v1196
        %v1210 = vmul.f32 %v1135, %v1197
        %v1211 = vmul.f32 %v1138, %v1198
        %v1212 = vmul.f32 %v1143, %v1199
        %v1213 = vtanh.pop %v1200
        %v1214 = vtanh.pop %v1201
        %v1215 = vtanh.pop %v1202
        %v1216 = vtanh.pop %v1203
        %v1217 = vtanh.pop %v1204
        %v1218 = vtanh.pop %v1205
        %v1219 = vtanh.pop %v1206
        %v1220 = vtanh.pop %v1207
        %v1221 = vtanh.pop %v1208
        %v1222 = vtanh.pop %v1209
        %v1223 = vtanh.pop %v1210
        %v1224 = vtanh.pop %v1211
        %v1225 = vtanh.pop %v1212
        %v1226 = vmul.f32 %v1148, %v1213
        %v1227 = vmul.f32 %v1149, %v1214
        %v1228 = vmul.f32 %v1150, %v1215
        %v1229 = vmul.f32 %v1151, %v1216
        %v1230 = vmul.f32 %v1152, %v1217
        %v1231 = vmul.f32 %v1153, %v1218
        %v1232 = vmul.f32 %v1154, %v1219
        %v1233 = vmul.f32 %v1155, %v1220
        %v1234 = vmul.f32 %v1156, %v1221
        %v1235 = vmul.f32 %v1157, %v1222
        %v1236 = vmul.f32 %v1158, %v1223
        %v1237 = vmul.f32 %v1159, %v1224
        %v1238 = vmul.f32 %v1160, %v1225
        %v1239 = vadd.f32 %v1148, %v1226
        %v1240 = vadd.f32 %v1149, %v1227
        %v1241 = vadd.f32 %v1150, %v1228
        %v1242 = vadd.f32 %v1151, %v1229
        %v1243 = vadd.f32 %v1152, %v1230
        %v1244 = vadd.f32 %v1153, %v1231
        %v1245 = vadd.f32 %v1154, %v1232
        %v1246 = vadd.f32 %v1155, %v1233
        %v1247 = vadd.f32 %v1156, %v1234
        %v1248 = vadd.f32 %v1157, %v1235
        %v1249 = vadd.f32 %v1158, %v1236
        %v1250 = vadd.f32 %v1159, %v1237
        %v1251 = vadd.f32 %v1160, %v1238
        %v1252 = vadd.f32 %v969, %v1239
        %v1253 = vadd.f32 %v970, %v1240
        %v1254 = vadd.f32 %v971, %v1241
        %v1255 = vadd.f32 %v972, %v1242
        %v1256 = vadd.f32 %v973, %v1243
        %v1257 = vadd.f32 %v974, %v1244
        %v1258 = vadd.f32 %v975, %v1245
        %v1259 = vadd.f32 %v976, %v1246
        %v1260 = vadd.f32 %v977, %v1247
        %v1261 = vadd.f32 %v978, %v1248
        %v1262 = vadd.f32 %v979, %v1249
        %v1263 = vadd.f32 %v980, %v1250
        %v1264 = vadd.f32 %v981, %v1251
        %v1265 = vpack.c.bf16 %v1253, %v1252
        %v1266 = vpack.c.bf16 %v1255, %v1254
        %v1267 = vpack.c.bf16 %v1257, %v1256
        %v1268 = vpack.c.bf16 %v1259, %v1258
        %v1269 = vpack.c.bf16 %v1261, %v1260
        %v1270 = vpack.c.bf16 %v1263, %v1262
        %v1271 = vpack.c.bf16 %v1264, %v1264
        %v1272 = vld [vmem:[%s7] sm:$0xf]
        %v1273 = vld [vmem:[%s7 + $0x4] sm:$0xf]
        %v1274 = vld [vmem:[%s7 + $0x8] sm:$0xf]
        %v1275 = vld [vmem:[%s7 + $0xc] sm:$0xf]
        %v1276 = vld [vmem:[%s7 + $0x10] sm:$0xf]
        %v1277 = vld [vmem:[%s7 + $0x14] sm:$0xf]
        %v1278 = vld [vmem:[%s7 + $0x18] sm:$0xf]
        %v1279 = vld [vmem:[%s7 + $0x1c] sm:$0xf]
        %v1280 = vld [vmem:[%s7 + $0x20] sm:$0xf]
        %v1281 = vld [vmem:[%s7 + $0x24] sm:$0xf]
        %v1282 = vld [vmem:[%s7 + $0x28] sm:$0xf]
        %v1283 = vld [vmem:[%s7 + $0x2c] sm:$0xf]
        %v1284 = vld [vmem:[%s7 + $0x30] sm:$0xf]
        %v1285 = vld [vmem:[%s7 + $0x34] sm:$0xf]
        %v1286 = vld [vmem:[%s7 + $0x38] sm:$0xf]
        %v1287 = vld [vmem:[%s7 + $0x3c] sm:$0xf]
        %v1288 = vld [vmem:[%s8] sm:$0x1]
        %v1290 = vlaneseq
        %v1291 = vshrl.u32 %v1290, 7
        %v1292 = vsub.s32 0, %v1291
        %v1293 = vrot.slane %v1288, %v1292
        %v1311 = vunpack.c.l.b16 %v1272
        %v1312 = vunpack.c.l.b16 %v1273
        %v1313 = vunpack.c.l.b16 %v1274
        %v1314 = vunpack.c.l.b16 %v1275
        %v1315 = vunpack.c.l.b16 %v1276
        %v1316 = vunpack.c.l.b16 %v1277
        %v1317 = vunpack.c.l.b16 %v1278
        %v1318 = vunpack.c.l.b16 %v1279
        %v1319 = vunpack.c.l.b16 %v1280
        %v1320 = vunpack.c.l.b16 %v1281
        %v1321 = vunpack.c.l.b16 %v1282
        %v1322 = vunpack.c.l.b16 %v1283
        %v1323 = vunpack.c.l.b16 %v1284
        %v1324 = vunpack.c.l.b16 %v1285
        %v1325 = vunpack.c.l.b16 %v1286
        %v1326 = vunpack.c.l.b16 %v1287
        %v1327 = vpack.c.b16 %v1312, %v1311
        %v1328 = vpack.c.b16 %v1314, %v1313
        %v1329 = vpack.c.b16 %v1316, %v1315
        %v1330 = vpack.c.b16 %v1318, %v1317
        %v1331 = vpack.c.b16 %v1320, %v1319
        %v1332 = vpack.c.b16 %v1322, %v1321
        %v1333 = vpack.c.b16 %v1324, %v1323
        %v1334 = vpack.c.b16 %v1326, %v1325
        %1343 = vmatprep.subr.bf16.mxu0 0
        %1344 = vmatpush1.bf16.msra.mxu0 %v1334
        %1345 = vmatprep.subr.bf16.mxu0 0
        %1346 = vmatpush1.bf16.msra.mxu0 %v1333
        %1347 = vmatprep.subr.bf16.mxu0 0
        %1348 = vmatpush1.bf16.msra.mxu0 %v1332
        %1349 = vmatprep.subr.bf16.mxu0 0
        %1350 = vmatpush1.bf16.msra.mxu0 %v1331
        %1351 = vmatprep.subr.bf16.mxu0 0
        %1352 = vmatpush1.bf16.msra.mxu0 %v1330
        %1353 = vmatprep.subr.bf16.mxu0 0
        %1354 = vmatpush1.bf16.msra.mxu0 %v1329
        %1355 = vmatprep.subr.bf16.mxu0 0
        %1356 = vmatpush1.bf16.msra.mxu0 %v1328
        %1357 = vmatprep.subr.bf16.mxu0 0
        %1358 = vmatpush1.bf16.msra.mxu0 %v1327
        %1359 = vmatprep.subr.bf16.mxu0 0
        %1360 = vmatpush2.bf16.msra.mxu0 0
        %1361 = vmatprep.subr.bf16.mxu0 0
        %1362 = vmatpush2.bf16.msra.mxu0 0
        %1363 = vmatprep.subr.bf16.mxu0 0
        %1364 = vmatpush2.bf16.msra.mxu0 0
        %1365 = vmatprep.subr.bf16.mxu0 0
        %1366 = vmatpush2.bf16.msra.mxu0 0
        %1367 = vmatprep.subr.bf16.mxu0 0
        %1368 = vmatpush2.bf16.msra.mxu0 0
        %1369 = vmatprep.subr.bf16.mxu0 0
        %1370 = vmatpush2.bf16.msra.mxu0 0
        %1371 = vmatprep.subr.bf16.mxu0 0
        %1372 = vmatpush2.bf16.msra.mxu0 0
        %1373 = vmatprep.subr.bf16.mxu0 0
        %1374 = vmatpush2.bf16.msra.mxu0 0
        %1375 = vmatprep.mubr.bf16.mxu0 0
        %1376 = vmatmul.mubr.bf16.gmra.mxu0 %v1265
        %v1377 = vpop.f32.mrf.mxu0
        %v1378 = vadd.f32 %v1293, %v1377
        %v1379 = vpop.f32.mrf.mxu0
        %v1380 = vpop.f32.mrf.mxu0
        %v1381 = vadd.f32 %v1293, %v1380
        %v1382 = vpop.f32.mrf.mxu0
        %1383 = vmatprep.mubr.bf16.mxu0 0
        %1384 = vmatmul.mubr.bf16.gmra.mxu0 %v1266
        %v1385 = vpop.f32.mrf.mxu0
        %v1386 = vadd.f32 %v1293, %v1385
        %v1387 = vpop.f32.mrf.mxu0
        %v1388 = vpop.f32.mrf.mxu0
        %v1389 = vadd.f32 %v1293, %v1388
        %v1390 = vpop.f32.mrf.mxu0
        %1391 = vmatprep.mubr.bf16.mxu0 0
        %1392 = vmatmul.mubr.bf16.gmra.mxu0 %v1267
        %v1393 = vpop.f32.mrf.mxu0
        %v1394 = vadd.f32 %v1293, %v1393
        %v1395 = vpop.f32.mrf.mxu0
        %v1396 = vpop.f32.mrf.mxu0
        %v1397 = vadd.f32 %v1293, %v1396
        %v1398 = vpop.f32.mrf.mxu0
        %1399 = vmatprep.mubr.bf16.mxu0 0
        %1400 = vmatmul.mubr.bf16.gmra.mxu0 %v1268
        %v1401 = vpop.f32.mrf.mxu0
        %v1402 = vadd.f32 %v1293, %v1401
        %v1403 = vpop.f32.mrf.mxu0
        %v1404 = vpop.f32.mrf.mxu0
        %v1405 = vadd.f32 %v1293, %v1404
        %v1406 = vpop.f32.mrf.mxu0
        %1407 = vmatprep.mubr.bf16.mxu0 0
        %1408 = vmatmul.mubr.bf16.gmra.mxu0 %v1269
        %v1409 = vpop.f32.mrf.mxu0
        %v1410 = vadd.f32 %v1293, %v1409
        %v1411 = vpop.f32.mrf.mxu0
        %v1412 = vpop.f32.mrf.mxu0
        %v1413 = vadd.f32 %v1293, %v1412
        %v1414 = vpop.f32.mrf.mxu0
        %1415 = vmatprep.mubr.bf16.mxu0 0
        %1416 = vmatmul.mubr.bf16.gmra.mxu0 %v1270
        %v1417 = vpop.f32.mrf.mxu0
        %v1418 = vadd.f32 %v1293, %v1417
        %v1419 = vpop.f32.mrf.mxu0
        %v1420 = vpop.f32.mrf.mxu0
        %v1421 = vadd.f32 %v1293, %v1420
        %v1422 = vpop.f32.mrf.mxu0
        %1423 = vmatprep.mubr.bf16.mxu0 0
        %1424 = vmatmul.mubr.bf16.gmra.mxu0 %v1271
        %v1425 = vpop.f32.mrf.mxu0
        %v1426 = vadd.f32 %v1293, %v1425
        %v1427 = vpop.f32.mrf.mxu0
        %v1428 = vpop.f32.mrf.mxu0
        %v1429 = vpop.f32.mrf.mxu0
        %1430 = vdwg.mxu0
        %v1431 = vmul.f32 %v1378, 0.5
        %v1432 = vmul.f32 %v1381, 0.5
        %v1433 = vmul.f32 %v1386, 0.5
        %v1434 = vmul.f32 %v1389, 0.5
        %v1435 = vmul.f32 %v1394, 0.5
        %v1436 = vmul.f32 %v1397, 0.5
        %v1437 = vmul.f32 %v1402, 0.5
        %v1438 = vmul.f32 %v1405, 0.5
        %v1439 = vmul.f32 %v1410, 0.5
        %v1440 = vmul.f32 %v1413, 0.5
        %v1441 = vmul.f32 %v1418, 0.5
        %v1442 = vmul.f32 %v1421, 0.5
        %v1443 = vmul.f32 %v1426, 0.5
        %v1444 = vmul.f32 %v1378, %v1378
        %v1445 = vmul.f32 %v1381, %v1381
        %v1446 = vmul.f32 %v1386, %v1386
        %v1447 = vmul.f32 %v1389, %v1389
        %v1448 = vmul.f32 %v1394, %v1394
        %v1449 = vmul.f32 %v1397, %v1397
        %v1450 = vmul.f32 %v1402, %v1402
        %v1451 = vmul.f32 %v1405, %v1405
        %v1452 = vmul.f32 %v1410, %v1410
        %v1453 = vmul.f32 %v1413, %v1413
        %v1454 = vmul.f32 %v1418, %v1418
        %v1455 = vmul.f32 %v1421, %v1421
        %v1456 = vmul.f32 %v1426, %v1426
        %v1457 = vmul.f32 %v1444, 0.035677407
        %v1458 = vmul.f32 %v1445, 0.035677407
        %v1459 = vmul.f32 %v1446, 0.035677407
        %v1460 = vmul.f32 %v1447, 0.035677407
        %v1461 = vmul.f32 %v1448, 0.035677407
        %v1462 = vmul.f32 %v1449, 0.035677407
        %v1463 = vmul.f32 %v1450, 0.035677407
        %v1464 = vmul.f32 %v1451, 0.035677407
        %v1465 = vmul.f32 %v1452, 0.035677407
        %v1466 = vmul.f32 %v1453, 0.035677407
        %v1467 = vmul.f32 %v1454, 0.035677407
        %v1468 = vmul.f32 %v1455, 0.035677407
        %v1469 = vmul.f32 %v1456, 0.035677407
        %v1470 = vadd.f32 %v1457, 0.7978846
        %v1471 = vadd.f32 %v1458, 0.7978846
        %v1472 = vadd.f32 %v1459, 0.7978846
        %v1473 = vadd.f32 %v1460, 0.7978846
        %v1474 = vadd.f32 %v1461, 0.7978846
        %v1475 = vadd.f32 %v1462, 0.7978846
        %v1476 = vadd.f32 %v1463, 0.7978846
        %v1477 = vadd.f32 %v1464, 0.7978846
        %v1478 = vadd.f32 %v1465, 0.7978846
        %v1479 = vadd.f32 %v1466, 0.7978846
        %v1480 = vadd.f32 %v1467, 0.7978846
        %v1481 = vadd.f32 %v1468, 0.7978846
        %v1482 = vadd.f32 %v1469, 0.7978846
        %v1483 = vmul.f32 %v1378, %v1470
        %v1484 = vmul.f32 %v1381, %v1471
        %v1485 = vmul.f32 %v1386, %v1472
        %v1486 = vmul.f32 %v1389, %v1473
        %v1487 = vmul.f32 %v1394, %v1474
        %v1488 = vmul.f32 %v1397, %v1475
        %v1489 = vmul.f32 %v1402, %v1476
        %v1490 = vmul.f32 %v1405, %v1477
        %v1491 = vmul.f32 %v1410, %v1478
        %v1492 = vmul.f32 %v1413, %v1479
        %v1493 = vmul.f32 %v1418, %v1480
        %v1494 = vmul.f32 %v1421, %v1481
        %v1495 = vmul.f32 %v1426, %v1482
        %v1496 = vtanh.pop %v1483
        %v1497 = vtanh.pop %v1484
        %v1498 = vtanh.pop %v1485
        %v1499 = vtanh.pop %v1486
        %v1500 = vtanh.pop %v1487
        %v1501 = vtanh.pop %v1488
        %v1502 = vtanh.pop %v1489
        %v1503 = vtanh.pop %v1490
        %v1504 = vtanh.pop %v1491
        %v1505 = vtanh.pop %v1492
        %v1506 = vtanh.pop %v1493
        %v1507 = vtanh.pop %v1494
        %v1508 = vtanh.pop %v1495
        %v1509 = vmul.f32 %v1431, %v1496
        %v1510 = vmul.f32 %v1432, %v1497
        %v1511 = vmul.f32 %v1433, %v1498
        %v1512 = vmul.f32 %v1434, %v1499
        %v1513 = vmul.f32 %v1435, %v1500
        %v1514 = vmul.f32 %v1436, %v1501
        %v1515 = vmul.f32 %v1437, %v1502
        %v1516 = vmul.f32 %v1438, %v1503
        %v1517 = vmul.f32 %v1439, %v1504
        %v1518 = vmul.f32 %v1440, %v1505
        %v1519 = vmul.f32 %v1441, %v1506
        %v1520 = vmul.f32 %v1442, %v1507
        %v1521 = vmul.f32 %v1443, %v1508
        %v1522 = vadd.f32 %v1431, %v1509
        %v1523 = vadd.f32 %v1432, %v1510
        %v1524 = vadd.f32 %v1433, %v1511
        %v1525 = vadd.f32 %v1434, %v1512
        %v1526 = vadd.f32 %v1435, %v1513
        %v1527 = vadd.f32 %v1436, %v1514
        %v1528 = vadd.f32 %v1437, %v1515
        %v1529 = vadd.f32 %v1438, %v1516
        %v1530 = vadd.f32 %v1439, %v1517
        %v1531 = vadd.f32 %v1440, %v1518
        %v1532 = vadd.f32 %v1441, %v1519
        %v1533 = vadd.f32 %v1442, %v1520
        %v1534 = vadd.f32 %v1443, %v1521
        %v1535 = vadd.f32 %v1252, %v1522
        %v1536 = vadd.f32 %v1253, %v1523
        %v1537 = vadd.f32 %v1254, %v1524
        %v1538 = vadd.f32 %v1255, %v1525
        %v1539 = vadd.f32 %v1256, %v1526
        %v1540 = vadd.f32 %v1257, %v1527
        %v1541 = vadd.f32 %v1258, %v1528
        %v1542 = vadd.f32 %v1259, %v1529
        %v1543 = vadd.f32 %v1260, %v1530
        %v1544 = vadd.f32 %v1261, %v1531
        %v1545 = vadd.f32 %v1262, %v1532
        %v1546 = vadd.f32 %v1263, %v1533
        %v1547 = vadd.f32 %v1264, %v1534
        %v1548 = vpack.c.bf16 %v1536, %v1535
        %v1549 = vpack.c.bf16 %v1538, %v1537
        %v1550 = vpack.c.bf16 %v1540, %v1539
        %v1551 = vpack.c.bf16 %v1542, %v1541
        %v1552 = vpack.c.bf16 %v1544, %v1543
        %v1553 = vpack.c.bf16 %v1546, %v1545
        %v1554 = vpack.c.bf16 %v1547, %v1547
        %v1555 = vld [vmem:[#allocation2] sm:$0xf]
        %v1556 = vld [vmem:[#allocation2 + $0x4] sm:$0xf]
        %v1557 = vld [vmem:[#allocation2 + $0x8] sm:$0xf]
        %v1558 = vld [vmem:[#allocation2 + $0xc] sm:$0xf]
        %v1559 = vld [vmem:[#allocation2 + $0x10] sm:$0xf]
        %v1560 = vld [vmem:[#allocation2 + $0x14] sm:$0xf]
        %v1561 = vld [vmem:[#allocation2 + $0x18] sm:$0xf]
        %v1562 = vld [vmem:[#allocation2 + $0x1c] sm:$0xf]
        %v1563 = vld [vmem:[#allocation2 + $0x20] sm:$0xf]
        %v1564 = vld [vmem:[#allocation2 + $0x24] sm:$0xf]
        %v1565 = vld [vmem:[#allocation2 + $0x28] sm:$0xf]
        %v1566 = vld [vmem:[#allocation2 + $0x2c] sm:$0xf]
        %v1567 = vld [vmem:[#allocation2 + $0x30] sm:$0xf]
        %v1568 = vld [vmem:[#allocation2 + $0x34] sm:$0xf]
        %v1569 = vld [vmem:[#allocation2 + $0x38] sm:$0xf]
        %v1570 = vld [vmem:[#allocation2 + $0x3c] sm:$0xf]
        %v1571 = vld [vmem:[%s10] sm:$0x1]
        %v1573 = vlaneseq
        %v1574 = vshrl.u32 %v1573, 7
        %v1575 = vsub.s32 0, %v1574
        %v1576 = vrot.slane %v1571, %v1575
        %v1594 = vunpack.c.l.b16 %v1555
        %v1595 = vunpack.c.l.b16 %v1556
        %v1596 = vunpack.c.l.b16 %v1557
        %v1597 = vunpack.c.l.b16 %v1558
        %v1598 = vunpack.c.l.b16 %v1559
        %v1599 = vunpack.c.l.b16 %v1560
        %v1600 = vunpack.c.l.b16 %v1561
        %v1601 = vunpack.c.l.b16 %v1562
        %v1602 = vunpack.c.l.b16 %v1563
        %v1603 = vunpack.c.l.b16 %v1564
        %v1604 = vunpack.c.l.b16 %v1565
        %v1605 = vunpack.c.l.b16 %v1566
        %v1606 = vunpack.c.l.b16 %v1567
        %v1607 = vunpack.c.l.b16 %v1568
        %v1608 = vunpack.c.l.b16 %v1569
        %v1609 = vunpack.c.l.b16 %v1570
        %v1610 = vpack.c.b16 %v1595, %v1594
        %v1611 = vpack.c.b16 %v1597, %v1596
        %v1612 = vpack.c.b16 %v1599, %v1598
        %v1613 = vpack.c.b16 %v1601, %v1600
        %v1614 = vpack.c.b16 %v1603, %v1602
        %v1615 = vpack.c.b16 %v1605, %v1604
        %v1616 = vpack.c.b16 %v1607, %v1606
        %v1617 = vpack.c.b16 %v1609, %v1608
        %1626 = vmatprep.subr.bf16.mxu0 0
        %1627 = vmatpush1.bf16.msra.mxu0 %v1617
        %1628 = vmatprep.subr.bf16.mxu0 0
        %1629 = vmatpush1.bf16.msra.mxu0 %v1616
        %1630 = vmatprep.subr.bf16.mxu0 0
        %1631 = vmatpush1.bf16.msra.mxu0 %v1615
        %1632 = vmatprep.subr.bf16.mxu0 0
        %1633 = vmatpush1.bf16.msra.mxu0 %v1614
        %1634 = vmatprep.subr.bf16.mxu0 0
        %1635 = vmatpush1.bf16.msra.mxu0 %v1613
        %1636 = vmatprep.subr.bf16.mxu0 0
        %1637 = vmatpush1.bf16.msra.mxu0 %v1612
        %1638 = vmatprep.subr.bf16.mxu0 0
        %1639 = vmatpush1.bf16.msra.mxu0 %v1611
        %1640 = vmatprep.subr.bf16.mxu0 0
        %1641 = vmatpush1.bf16.msra.mxu0 %v1610
        %1642 = vmatprep.subr.bf16.mxu0 0
        %1643 = vmatpush2.bf16.msra.mxu0 0
        %1644 = vmatprep.subr.bf16.mxu0 0
        %1645 = vmatpush2.bf16.msra.mxu0 0
        %1646 = vmatprep.subr.bf16.mxu0 0
        %1647 = vmatpush2.bf16.msra.mxu0 0
        %1648 = vmatprep.subr.bf16.mxu0 0
        %1649 = vmatpush2.bf16.msra.mxu0 0
        %1650 = vmatprep.subr.bf16.mxu0 0
        %1651 = vmatpush2.bf16.msra.mxu0 0
        %1652 = vmatprep.subr.bf16.mxu0 0
        %1653 = vmatpush2.bf16.msra.mxu0 0
        %1654 = vmatprep.subr.bf16.mxu0 0
        %1655 = vmatpush2.bf16.msra.mxu0 0
        %1656 = vmatprep.subr.bf16.mxu0 0
        %1657 = vmatpush2.bf16.msra.mxu0 0
        %1658 = vmatprep.mubr.bf16.mxu0 0
        %1659 = vmatmul.mubr.bf16.gmra.mxu0 %v1548
        %v1660 = vpop.f32.mrf.mxu0
        %v1661 = vadd.f32 %v1576, %v1660
        %v1662 = vpop.f32.mrf.mxu0
        %v1663 = vpop.f32.mrf.mxu0
        %v1664 = vadd.f32 %v1576, %v1663
        %v1665 = vpop.f32.mrf.mxu0
        %1666 = vmatprep.mubr.bf16.mxu0 0
        %1667 = vmatmul.mubr.bf16.gmra.mxu0 %v1549
        %v1668 = vpop.f32.mrf.mxu0
        %v1669 = vadd.f32 %v1576, %v1668
        %v1670 = vpop.f32.mrf.mxu0
        %v1671 = vpop.f32.mrf.mxu0
        %v1672 = vadd.f32 %v1576, %v1671
        %v1673 = vpop.f32.mrf.mxu0
        %1674 = vmatprep.mubr.bf16.mxu0 0
        %1675 = vmatmul.mubr.bf16.gmra.mxu0 %v1550
        %v1676 = vpop.f32.mrf.mxu0
        %v1677 = vadd.f32 %v1576, %v1676
        %v1678 = vpop.f32.mrf.mxu0
        %v1679 = vpop.f32.mrf.mxu0
        %v1680 = vadd.f32 %v1576, %v1679
        %v1681 = vpop.f32.mrf.mxu0
        %1682 = vmatprep.mubr.bf16.mxu0 0
        %1683 = vmatmul.mubr.bf16.gmra.mxu0 %v1551
        %v1684 = vpop.f32.mrf.mxu0
        %v1685 = vadd.f32 %v1576, %v1684
        %v1686 = vpop.f32.mrf.mxu0
        %v1687 = vpop.f32.mrf.mxu0
        %v1688 = vadd.f32 %v1576, %v1687
        %v1689 = vpop.f32.mrf.mxu0
        %1690 = vmatprep.mubr.bf16.mxu0 0
        %1691 = vmatmul.mubr.bf16.gmra.mxu0 %v1552
        %v1692 = vpop.f32.mrf.mxu0
        %v1693 = vadd.f32 %v1576, %v1692
        %v1694 = vpop.f32.mrf.mxu0
        %v1695 = vpop.f32.mrf.mxu0
        %v1696 = vadd.f32 %v1576, %v1695
        %v1697 = vpop.f32.mrf.mxu0
        %1698 = vmatprep.mubr.bf16.mxu0 0
        %1699 = vmatmul.mubr.bf16.gmra.mxu0 %v1553
        %v1700 = vpop.f32.mrf.mxu0
        %v1701 = vadd.f32 %v1576, %v1700
        %v1702 = vpop.f32.mrf.mxu0
        %v1703 = vpop.f32.mrf.mxu0
        %v1704 = vadd.f32 %v1576, %v1703
        %v1705 = vpop.f32.mrf.mxu0
        %1706 = vmatprep.mubr.bf16.mxu0 0
        %1707 = vmatmul.mubr.bf16.gmra.mxu0 %v1554
        %v1708 = vpop.f32.mrf.mxu0
        %v1709 = vadd.f32 %v1576, %v1708
        %v1710 = vpop.f32.mrf.mxu0
        %v1711 = vpop.f32.mrf.mxu0
        %v1712 = vpop.f32.mrf.mxu0
        %1713 = vdwg.mxu0
        %1714 = vst [vmem:[%s395] sm:$0xff] %v1661
        %1715 = vst [vmem:[%s395 + $0x8] sm:$0xff] %v1664
        %1716 = vst [vmem:[%s395 + $0x10] sm:$0xff] %v1669
        %1717 = vst [vmem:[%s395 + $0x18] sm:$0xff] %v1672
        %1718 = vst [vmem:[%s395 + $0x20] sm:$0xff] %v1677
        %1719 = vst [vmem:[%s395 + $0x28] sm:$0xff] %v1680
        %1720 = vst [vmem:[%s395 + $0x30] sm:$0xff] %v1685
        %1721 = vst [vmem:[%s395 + $0x38] sm:$0xff] %v1688
        %1722 = vst [vmem:[%s395 + $0x40] sm:$0xff] %v1693
        %1723 = vst [vmem:[%s395 + $0x48] sm:$0xff] %v1696
        %1724 = vst [vmem:[%s395 + $0x50] sm:$0xff] %v1701
        %1725 = vst [vmem:[%s395 + $0x58] sm:$0xff] %v1704
        %1726 = vst [vmem:[%s395 + $0x60] sm:$0xff] %v1709
        %s1727 = sand.u32 %s270, 1
        %s1728 = scalar_lea.sflag [#allocation4], %s1727
        %s1729 = sand.u32 %s270, 1
        %s1730 = smul.addr %s1729, 104
        %s1731 = scalar_lea.vmem [#allocation5], %s1730
        // Predicated region
        $region69: #{tpu_custom_call.1} parent=63 // pred_check
          %p1732 = pneg %p280
        $region70: #{tpu_custom_call.1} parent=63 // pred_check_branch
          %1734 = sbr.rel (%p1732) target = $region72
        $region71: #{tpu_custom_call.1} parent=63 // pred_region
          %s1735 = smul.u32 13, %s26
          %s1737 = ssub.s32 1664, 1664
          %1738 = vsyncadd %s1728, %s1737
          %s1739 = smul.addr %s1735, 128
          %s1740 = scalar_lea.hbm %s11, %s1739
          %s1741 = sshll.u32 %s1731, 4
          %s1742 = int_to_ptr.vmem [resolvable:$true] %s1741
          %1747 = dma.vmem_to_hbm [thread:$0]  %s1742, 1664, %s1740, %s1728, 128, 128, 8
        $region72: #{tpu_custom_call.1} parent=63 // pred_fallthru
          _
      $region64: #{tpu_custom_call.1} parent=5 // pred_fallthru
        _
      %p1748 = scmp.le.s32.totalorder 2, %s21
      // Predicated region
      $region73: #{tpu_custom_call.1} parent=5 // pred_check
        %p1749 = pneg %p1748
      $region74: #{tpu_custom_call.1} parent=5 // pred_check_branch
        %1751 = sbr.rel (%p1749) target = $region76
      $region75: #{tpu_custom_call.1} parent=5 // pred_region
        %s1752 = ssub.s32 %s21, 2
        // Predicated region
        $region77: #{tpu_custom_call.1} parent=75 // pred_check
          %p1753 = pneg %p286
        $region78: #{tpu_custom_call.1} parent=75 // pred_check_branch
          %1755 = sbr.rel (%p1753) target = $region80
        $region79: #{tpu_custom_call.1} parent=75 // pred_region
          %s1756 = sand.u32 %s271, 1
          %s1757 = scalar_lea.sflag [#allocation4], %s1756
          %s1758 = sand.u32 %s271, 1
          %s1759 = smul.addr %s1758, 104
          %s1760 = scalar_lea.vmem [#allocation5], %s1759
          %1761 = dma.done %s1757, 1664
        $region80: #{tpu_custom_call.1} parent=75 // pred_fallthru
          _
      $region76: #{tpu_custom_call.1} parent=5 // pred_fallthru
        _
    $region6: #{tpu_custom_call.1} parent=1 // loop_footer
      %s25 = sadd.s32 1, %s21
    $region7: #{tpu_custom_call.1} parent=1 // loop_footer_branch
      %20 = sbr.rel target = $region3
    $region8: #{tpu_custom_call.1} parent=1 // loop_exit
      _
    %1762 = vsyncpa [#allocation3], 1
    %s1763 = scalar_lea.sflag [#allocation3], 1
    %1764 = vsyncpa %s1763, 1
    %1765 = vsyncpa [#allocation4], 1
    %s1766 = scalar_lea.sflag [#allocation4], 1
    %1767 = vsyncpa %s1766, 1

</llo_original>
